<compile_context>
chip_gen: v6e
topology: v6e:2x2x1
jax: 0.10.0
libtpu: 0.0.40
codegen_flags: <defaults>
</compile_context>

<pallas_src>
import jax
import jax.numpy as jnp
from jax.experimental import pallas as pl
from jax.experimental.pallas import tpu as pltpu


# ---------------------------------------------------------------------------
# Fused ABCNN kernel: Wide_Conv stack + attention pooling + fc head
# ---------------------------------------------------------------------------
def abcnn_kernel(xp_ref, maskp_ref, w_ref, cw_ref, cb_ref,
                 fc1w_ref, fc1b_ref, lng_ref, lnb_ref, fc2w_ref, fc2b_ref,
                 out_ref):
    S, ND = xp_ref.shape            # packed slab: seq on sublanes, 2B*D lanes
    L, _, D = w_ref.shape
    N = ND // D                     # number of sequences = 2 * B
    B = N // 2
    BS = B * S
    f32 = jnp.float32

    x = xp_ref[...]                 # (S, N*D) packed activations, both streams
    maskp = maskp_ref[...]          # (S, N*D) 1.0 where token != 0

    # ---- hoisted masks / constants (computed once, full shape) -------------
    dcol = jax.lax.broadcasted_iota(jnp.int32, (S, D), 1)         # 0..D-1
    nfc = jnp.concatenate([(dcol != 0).astype(f32)] * N, axis=1)  # (S, N*D)
    nlc = jnp.concatenate([(dcol != D - 1).astype(f32)] * N, axis=1)

    # block-diagonal (same-batch) mask for the collapsed Gram match-score
    bidx = jnp.concatenate([jnp.full((S, 1), b, f32) for b in range(B)],
                           axis=0)                                 # (BS, 1)
    bd = (bidx == jnp.transpose(bidx)).astype(f32)                 # (BS, BS)

    zrow = jnp.zeros((1, ND), f32)
    zcol = jnp.zeros((S, 1), f32)

    # ---- zero-padded shifts (seq on sublanes, embed inside lane groups) ----
    def shift_down(a):   # out[s, :] = a[s-1, :]   (zeros at s == 0)
        return jnp.concatenate([zrow, a[:S - 1, :]], axis=0)

    def shift_up(a):     # out[s, :] = a[s+1, :]   (zeros at s == S-1)
        return jnp.concatenate([a[1:, :], zrow], axis=0)

    def shift_right(a):  # out[:, nD+d] = a[:, nD+d-1]   (zeros at d == 0)
        return jnp.concatenate([zcol, a[:, :ND - 1]], axis=1) * nfc

    def shift_left(a):   # out[:, nD+d] = a[:, nD+d+1]   (zeros at d == D-1)
        return jnp.concatenate([a[:, 1:], zcol], axis=1) * nlc

    def conv_channel(a, wbase):
        # 3x3 cross-correlation with zero padding, factored as
        # 3 lane taps -> 3 per-row blends -> 3 sublane taps.
        am1 = shift_right(a)        # x[s, d-1]
        ap1 = shift_left(a)         # x[s, d+1]
        rows = [cw_ref[wbase + 3 * di + 0] * am1
                + cw_ref[wbase + 3 * di + 1] * a
                + cw_ref[wbase + 3 * di + 2] * ap1
                for di in range(3)]
        return shift_down(rows[0]) + rows[1] + shift_up(rows[2])

    def conv2d_tanh(ch0, ch1, layer):
        # Conv2d(in=2, out=1, k=3, pad=1) on stacked channels + tanh
        base = layer * 18
        return jnp.tanh(conv_channel(ch0, base)
                        + conv_channel(ch1, base + 9) + cb_ref[layer])

    def seq_avg3(a):
        # avg_pool1d over seq: kernel=3, pad=1, stride=1, count_include_pad
        return (shift_down(a) + a + shift_up(a)) * (1.0 / 3.0)

    def unpack_streams(a_p):
        # packed (S, N*D) -> two (B*S, D) slabs (rows: batch-major, seq-minor)
        s1 = jnp.concatenate([a_p[:, n * D:(n + 1) * D] for n in range(B)],
                             axis=0)
        s2 = jnp.concatenate([a_p[:, n * D:(n + 1) * D] for n in range(B, N)],
                             axis=0)
        return s1, s2

    def match_score_bd(a_p):
        # Block-diagonal score matrix over ALL batches with one Gram matmul:
        #   A[(b,s), (b',t)] = (b == b') / (1 + ||s1m[b,s] - s2m[b,t]||_2)
        am, bm = unpack_streams(a_p * maskp)
        gram = jax.lax.dot_general(am, bm, (((1,), (1,)), ((), ())),
                                   preferred_element_type=f32)     # (BS, BS)
        sqa = jnp.sum(am * am, axis=1, keepdims=True)              # (BS, 1)
        sqb = jnp.sum(bm * bm, axis=1, keepdims=True)              # (BS, 1)
        d2 = jnp.maximum(sqa + jnp.transpose(sqb) - 2.0 * gram, 0.0)
        return bd / (1.0 + jnp.sqrt(d2))     # exact; off-diag blocks zeroed

    # ---- per-layer pooled means, packed as (1, N*D) rows --------------------
    pooled = [jnp.mean(x, axis=0, keepdims=True)]      # layer-0: embeddings

    for l in range(L):
        wl = w_ref[l]                                   # (S, D)
        wt = jnp.concatenate([wl] * B, axis=0)          # (BS, D), tiled per batch

        # ---- Wide_Conv ------------------------------------------------------
        A = match_score_bd(x)                                       # (BS, BS)
        attn1 = jnp.dot(A, wt, preferred_element_type=f32)          # (BS, D)
        attn2 = jnp.dot(jnp.transpose(A), wt,
                        preferred_element_type=f32)                 # (BS, D)
        attn_p = jnp.concatenate(
            [attn1[b * S:(b + 1) * S, :] for b in range(B)]
            + [attn2[b * S:(b + 1) * S, :] for b in range(B)], axis=1)
        o = conv2d_tanh(x, attn_p, l)                                # (S, N*D)

        pooled.append(jnp.mean(o, axis=0, keepdims=True))

        # ---- attention_avg_pooling + residual -------------------------------
        A2 = match_score_bd(o)                                       # (BS, BS)
        w1 = jnp.sum(A2, axis=1, keepdims=True)                      # (BS, 1)
        w2 = jnp.transpose(jnp.sum(A2, axis=0, keepdims=True))       # (BS, 1)
        weighted = jnp.concatenate(
            [o[:, n * D:(n + 1) * D] * w1[n * S:(n + 1) * S, :]
             for n in range(B)]
            + [o[:, n * D:(n + 1) * D] * w2[(n - B) * S:(n - B + 1) * S, :]
               for n in range(B, N)], axis=1)
        x = seq_avg3(weighted) + x

    # ---- fc head: ONE fc1 matmul -> LayerNorm -> ReLU -> fc2 ----------------
    feat_rows = []
    for b in range(B):
        feat_rows.append(jnp.concatenate(
            [pooled[p][:, b * D:(b + 1) * D] for p in range(L + 1)]
            + [pooled[p][:, (B + b) * D:(B + b + 1) * D] for p in range(L + 1)],
            axis=1))
    feats = jnp.concatenate(feat_rows, axis=0)          # (B, 2F), F=(1+L)*D
    h = jnp.dot(feats, fc1w_ref[...],
                preferred_element_type=f32) + fc1b_ref[...]
    mu = jnp.mean(h, axis=-1, keepdims=True)
    var = jnp.mean((h - mu) * (h - mu), axis=-1, keepdims=True)
    h = (h - mu) * jax.lax.rsqrt(var + 1e-5) * lng_ref[...] + lnb_ref[...]
    h = jnp.maximum(h, 0.0)
    out_ref[...] = (jnp.dot(h, fc2w_ref[...], preferred_element_type=f32)
                    + fc2b_ref[...])


# ---------------------------------------------------------------------------
# Wrapper: embedding gather + lane-dense packing + pallas_call
# ---------------------------------------------------------------------------
@jax.jit
def abcnn_forward(q1, q2, params):
    emb = params["embedding"]
    B, S = q1.shape
    D = emb.shape[1]
    L = params["W"].shape[0]
    LIN = params["fc1_w"].shape[1]
    C = params["fc2_w"].shape[1]
    N = 2 * B

    # glue (plain JAX / XLA): embedding gather + masks + lane-dense packing
    q1e = jnp.take(emb, q1, axis=0).astype(jnp.float32)          # (B, S, D)
    q2e = jnp.take(emb, q2, axis=0).astype(jnp.float32)
    seqs = jnp.concatenate([q1e, q2e], axis=0)                   # (N, S, D)
    xp = jnp.transpose(seqs, (1, 0, 2)).reshape(S, N * D)        # (S, N*D)

    m = jnp.concatenate([(q1 != 0), (q2 != 0)],
                        axis=0).astype(jnp.float32)              # (N, S)
    maskp = jnp.repeat(jnp.transpose(m), D, axis=1)              # (S, N*D)

    # advisory cost estimate (review item 10)
    BSr = B * S
    F2 = 2 * (L + 1) * D
    flops = (L * 8 * BSr * BSr * D                  # 2 Grams + 2 attn matmuls
             + L * 72 * S * N * D                   # 3x3 conv, 2 ch, mul+add
             + 2 * B * F2 * LIN + 2 * B * LIN * C)  # fc head
    transcendentals = L * (S * N * D + 2 * BSr * BSr)            # tanh + sqrt
    param_bytes = 4 * sum(int(params[k].size) for k in
                          ("W", "conv_w_flat", "conv_b", "fc1_w", "fc1_b",
                           "ln_g", "ln_b", "fc2_w", "fc2_b"))
    bytes_accessed = 4 * (int(xp.size) + int(maskp.size) + B * C) + param_bytes

    logits = pl.pallas_call(
        abcnn_kernel,
        out_shape=jax.ShapeDtypeStruct((B, C), jnp.float32),
        in_specs=[
            pl.BlockSpec(memory_space=pltpu.MemorySpace.VMEM),   # xp (packed)
            pl.BlockSpec(memory_space=pltpu.MemorySpace.VMEM),   # maskp
            pl.BlockSpec(memory_space=pltpu.MemorySpace.VMEM),   # W (L,S,D)
            pl.BlockSpec(memory_space=pltpu.MemorySpace.SMEM),   # conv weights
            pl.BlockSpec(memory_space=pltpu.MemorySpace.SMEM),   # conv biases
            pl.BlockSpec(memory_space=pltpu.MemorySpace.VMEM),   # fc1_w
            pl.BlockSpec(memory_space=pltpu.MemorySpace.VMEM),   # fc1_b
            pl.BlockSpec(memory_space=pltpu.MemorySpace.VMEM),   # ln_g
            pl.BlockSpec(memory_space=pltpu.MemorySpace.VMEM),   # ln_b
            pl.BlockSpec(memory_space=pltpu.MemorySpace.VMEM),   # fc2_w
            pl.BlockSpec(memory_space=pltpu.MemorySpace.VMEM),   # fc2_b
        ],
        out_specs=pl.BlockSpec(memory_space=pltpu.MemorySpace.VMEM),
        compiler_params=pltpu.CompilerParams(
            vmem_limit_bytes=32 * 1024 * 1024),       # fits v7x's 64 MiB VMEM
        cost_estimate=pl.CostEstimate(
            flops=int(flops), transcendentals=int(transcendentals),
            bytes_accessed=int(bytes_accessed)),
    )(xp, maskp, params["W"], params["conv_w_flat"], params["conv_b"],
      params["fc1_w"], params["fc1_b"], params["ln_g"], params["ln_b"],
      params["fc2_w"], params["fc2_b"])

    probs = jax.nn.softmax(logits, axis=-1)
    pred = jnp.argmax(probs, axis=-1)
    return logits, pred


# ---------------------------------------------------------------------------
# Pure-JAX reference (direct translation of the PyTorch module) for checking
# ---------------------------------------------------------------------------
def abcnn_reference(q1, q2, params):
    emb = params["embedding"]
    B, S = q1.shape
    D = emb.shape[1]
    L = params["W"].shape[0]
    q1e = jnp.take(emb, q1, axis=0).astype(jnp.float32)
    q2e = jnp.take(emb, q2, axis=0).astype(jnp.float32)
    m1 = (q1 != 0).astype(jnp.float32)
    m2 = (q2 != 0).astype(jnp.float32)
    convw = params["conv_w_flat"].reshape(L, 2, 3, 3)
    convb = params["conv_b"]

    def match(s1, s2):
        s1m = s1 * m1[:, :, None]
        s2m = s2 * m2[:, :, None]
        diff = s1m[:, :, None, :] - s2m[:, None, :, :]
        dist = jnp.sqrt(jnp.sum(diff * diff, axis=-1))
        return 1.0 / (1.0 + dist)

    def conv3x3(x2ch, w, bias):          # x2ch: (B, 2, S, D)
        xpad = jnp.pad(x2ch, ((0, 0), (0, 0), (1, 1), (1, 1)))
        out = jnp.zeros((B, S, D), jnp.float32) + bias
        for c in range(2):
            for di in range(3):
                for dj in range(3):
                    out = out + w[c, di, dj] * xpad[:, c, di:di + S, dj:dj + D]
        return out

    def avg3(xx):                        # (B, S, D), pool over seq
        xpad = jnp.pad(xx, ((0, 0), (1, 1), (0, 0)))
        return (xpad[:, 0:S] + xpad[:, 1:S + 1] + xpad[:, 2:S + 2]) / 3.0

    res1 = [jnp.mean(q1e, axis=1)]
    res2 = [jnp.mean(q2e, axis=1)]
    x1, x2 = q1e, q2e
    for l in range(L):
        A = match(x1, x2)
        at1 = jnp.einsum('bst,td->bsd', A, params["W"][l])
        at2 = jnp.einsum('bst,sd->btd', A, params["W"][l])
        o1 = jnp.tanh(conv3x3(jnp.stack([x1, at1], axis=1), convw[l], convb[l]))
        o2 = jnp.tanh(conv3x3(jnp.stack([x2, at2], axis=1), convw[l], convb[l]))
        res1.append(jnp.mean(o1, axis=1))
        res2.append(jnp.mean(o2, axis=1))
        A2 = match(o1, o2)
        w1 = jnp.sum(A2, axis=2)
        w2 = jnp.sum(A2, axis=1)
        x1 = avg3(o1 * w1[:, :, None]) + x1
        x2 = avg3(o2 * w2[:, :, None]) + x2
    feats = jnp.concatenate(res1 + res2, axis=1)
    h = feats @ params["fc1_w"] + params["fc1_b"]
    mu = jnp.mean(h, axis=-1, keepdims=True)
    var = jnp.mean((h - mu) ** 2, axis=-1, keepdims=True)
    h = (h - mu) / jnp.sqrt(var + 1e-5) * params["ln_g"] + params["ln_b"]
    h = jnp.maximum(h, 0.0)
    return h @ params["fc2_w"] + params["fc2_b"]


# ---------------------------------------------------------------------------
# Deterministic parameter construction (synthetic, shapes from module __init__)
# ---------------------------------------------------------------------------
def make_params(key, vocab, seq_len, embed_dim, num_layer, linear_size,
                num_class):
    ks = jax.random.split(key, 8)
    xavier_std = (2.0 / (seq_len + embed_dim)) ** 0.5
    fan_conv = 2 * 3 * 3
    k_conv = 1.0 / (fan_conv ** 0.5)
    in_fc1 = embed_dim * (1 + num_layer) * 2

    return {
        "embedding": 0.1 * jax.random.normal(ks[0], (vocab, embed_dim),
                                             jnp.float32),
        "W": xavier_std * jax.random.normal(
            ks[1], (num_layer, seq_len, embed_dim), jnp.float32),
        "conv_w_flat": jax.random.uniform(ks[2], (num_layer * 2 * 3 * 3,),
                                          jnp.float32, -k_conv, k_conv),
        "conv_b": jax.random.uniform(ks[3], (num_layer,), jnp.float32,
                                     -k_conv, k_conv),
        "fc1_w": (1.0 / (in_fc1 ** 0.5)) * jax.random.normal(
            ks[4], (in_fc1, linear_size), jnp.float32),
        "fc1_b": jnp.zeros((1, linear_size), jnp.float32),
        "ln_g": jnp.ones((1, linear_size), jnp.float32),
        "ln_b": jnp.zeros((1, linear_size), jnp.float32),
        "fc2_w": (1.0 / (linear_size ** 0.5)) * jax.random.normal(
            ks[5], (linear_size, num_class), jnp.float32),
        "fc2_b": jnp.zeros((1, num_class), jnp.float32),
    }


if __name__ == "__main__":
    # small, module-consistent shapes
    B, S, D = 2, 8, 32          # batch, max_seq_len, embed_dim
    VOCAB = 20
    NUM_LAYER = 2
    LINEAR_SIZE = 64
    NUM_CLASS = 4

    key = jax.random.PRNGKey(0)
    kq1, kq2, kp = jax.random.split(key, 3)

    # token ids; id 0 acts as padding (mask = q.eq(0))
    q1 = jax.random.randint(kq1, (B, S), 0, VOCAB, dtype=jnp.int32)
    q2 = jax.random.randint(kq2, (B, S), 0, VOCAB, dtype=jnp.int32)
    q1 = q1.at[:, -1].set(0)
    q2 = q2.at[:, -2:].set(0)

    params = make_params(kp, VOCAB, S, D, NUM_LAYER, LINEAR_SIZE, NUM_CLASS)

    logits, pred = abcnn_forward(q1, q2, params)
    jax.block_until_ready((logits, pred))

    assert logits.shape == (B, NUM_CLASS)
    assert pred.shape == (B,)

    # Correctness check against the straight-line JAX translation of the
    # PyTorch module.  The only legitimate difference is fp noise from the
    # Gram-form distance vs. the reference's direct ||a - b|| (structural
    # bugs would show up as O(0.1) differences).
    ref_logits = abcnn_reference(q1, q2, params)
    err = float(jnp.max(jnp.abs(logits - ref_logits)))
    assert err < 3e-2, f"kernel/reference mismatch: max abs diff = {err}"

    print("KERNEL_OK")
</pallas_src>

<mosaic_0001>
module attributes {stable_mosaic.version = 11 : i64} {
  func.func @abcnn_kernel(%arg0: memref<8x128xf32, #tpu.memory_space<vmem>>, %arg1: memref<8x128xf32, #tpu.memory_space<vmem>>, %arg2: memref<2x8x32xf32, #tpu.memory_space<vmem>>, %arg3: memref<36xf32, #tpu.memory_space<smem>>, %arg4: memref<2xf32, #tpu.memory_space<smem>>, %arg5: memref<192x64xf32, #tpu.memory_space<vmem>>, %arg6: memref<1x64xf32, #tpu.memory_space<vmem>>, %arg7: memref<1x64xf32, #tpu.memory_space<vmem>>, %arg8: memref<1x64xf32, #tpu.memory_space<vmem>>, %arg9: memref<64x4xf32, #tpu.memory_space<vmem>>, %arg10: memref<1x4xf32, #tpu.memory_space<vmem>>, %arg11: memref<2x4xf32, #tpu.memory_space<vmem>>) attributes {dimension_semantics = [], scalar_prefetch = 0 : i64, scratch_operands = 0 : i64, tpu.core_type = #tpu.core_type<tc>} {
    %c0 = arith.constant 0 : index
    %c0_0 = arith.constant 0 : index
    %0 = vector.load %arg0[%c0, %c0_0] : memref<8x128xf32, #tpu.memory_space<vmem>>, vector<8x128xf32>
    %c0_1 = arith.constant 0 : index
    %c0_2 = arith.constant 0 : index
    %1 = vector.load %arg1[%c0_1, %c0_2] : memref<8x128xf32, #tpu.memory_space<vmem>>, vector<8x128xf32>
    %2 = tpu.iota {dimensions = array<i32: 1>} : vector<8x32xi32>
    %c0_i32 = arith.constant 0 : i32
    %3 = vector.broadcast %c0_i32 : i32 to vector<8x32xi32>
    %4 = arith.cmpi ne, %2, %3 : vector<8x32xi32>
    %5 = arith.extui %4 : vector<8x32xi1> to vector<8x32xi32>
    %6 = arith.sitofp %5 : vector<8x32xi32> to vector<8x32xf32>
    %7 = tpu.concatenate %6, %6, %6, %6 in 1 : vector<8x32xf32>, vector<8x32xf32>, vector<8x32xf32>, vector<8x32xf32> -> vector<8x128xf32>
    %c31_i32 = arith.constant 31 : i32
    %8 = vector.broadcast %c31_i32 : i32 to vector<8x32xi32>
    %9 = arith.cmpi ne, %2, %8 : vector<8x32xi32>
    %10 = arith.extui %9 : vector<8x32xi1> to vector<8x32xi32>
    %11 = arith.sitofp %10 : vector<8x32xi32> to vector<8x32xf32>
    %12 = tpu.concatenate %11, %11, %11, %11 in 1 : vector<8x32xf32>, vector<8x32xf32>, vector<8x32xf32>, vector<8x32xf32> -> vector<8x128xf32>
    %cst = arith.constant 0.000000e+00 : f32
    %13 = vector.broadcast %cst : f32 to vector<8x1xf32>
    %cst_3 = arith.constant 1.000000e+00 : f32
    %14 = vector.broadcast %cst_3 : f32 to vector<8x1xf32>
    %15 = tpu.concatenate %13, %14 in 0 : vector<8x1xf32>, vector<8x1xf32> -> vector<16x1xf32>
    %16 = tpu.transpose %15, [1, 0] : vector<16x1xf32> -> vector<1x16xf32>
    %17 = vector.broadcast %15 : vector<16x1xf32> to vector<16x16xf32>
    %18 = vector.broadcast %16 : vector<1x16xf32> to vector<16x16xf32>
    %19 = arith.cmpf oeq, %17, %18 : vector<16x16xf32>
    %20 = arith.extui %19 : vector<16x16xi1> to vector<16x16xi32>
    %21 = arith.sitofp %20 : vector<16x16xi32> to vector<16x16xf32>
    %cst_4 = arith.constant 0.000000e+00 : f32
    %22 = vector.broadcast %cst_4 : f32 to vector<1x128xf32>
    %cst_5 = arith.constant 0.000000e+00 : f32
    %23 = vector.broadcast %cst_5 : f32 to vector<8x1xf32>
    %cst_6 = arith.constant dense<0.000000e+00> : vector<128xf32>
    %24 = vector.multi_reduction <add>, %0, %cst_6 [0] : vector<8x128xf32> to vector<128xf32>
    %25 = vector.shape_cast %24 : vector<128xf32> to vector<1x128xf32>
    %cst_7 = arith.constant 8.000000e+00 : f32
    %26 = vector.broadcast %cst_7 : f32 to vector<1x128xf32>
    %27 = arith.divf %25, %26 : vector<1x128xf32>
    %c0_8 = arith.constant 0 : index
    %c0_9 = arith.constant 0 : index
    %c0_10 = arith.constant 0 : index
    %28 = vector.load %arg2[%c0_8, %c0_9, %c0_10] : memref<2x8x32xf32, #tpu.memory_space<vmem>>, vector<1x8x32xf32>
    %29 = vector.shape_cast %28 : vector<1x8x32xf32> to vector<8x32xf32>
    %30 = tpu.concatenate %29, %29 in 0 : vector<8x32xf32>, vector<8x32xf32> -> vector<16x32xf32>
    %31 = arith.mulf %0, %1 : vector<8x128xf32>
    %32 = vector.extract_strided_slice %31 {offsets = [0, 0], sizes = [8, 32], strides = [1, 1]} : vector<8x128xf32> to vector<8x32xf32>
    %33 = vector.extract_strided_slice %31 {offsets = [0, 32], sizes = [8, 32], strides = [1, 1]} : vector<8x128xf32> to vector<8x32xf32>
    %34 = tpu.concatenate %32, %33 in 0 : vector<8x32xf32>, vector<8x32xf32> -> vector<16x32xf32>
    %35 = vector.extract_strided_slice %31 {offsets = [0, 64], sizes = [8, 32], strides = [1, 1]} : vector<8x128xf32> to vector<8x32xf32>
    %36 = vector.extract_strided_slice %31 {offsets = [0, 96], sizes = [8, 32], strides = [1, 1]} : vector<8x128xf32> to vector<8x32xf32>
    %37 = tpu.concatenate %35, %36 in 0 : vector<8x32xf32>, vector<8x32xf32> -> vector<16x32xf32>
    %cst_11 = arith.constant dense<0.000000e+00> : vector<16x16xf32>
    %38 = tpu.matmul %34, %37, %cst_11 {dimension_numbers = #tpu.dot_dimension_numbers<[1], [1], [0], [0], [0, 0, 1, 0], [], []>} : vector<16x32xf32>, vector<16x32xf32>, vector<16x16xf32> -> vector<16x16xf32>
    %39 = arith.mulf %34, %34 : vector<16x32xf32>
    %cst_12 = arith.constant dense<0.000000e+00> : vector<16xf32>
    %40 = vector.multi_reduction <add>, %39, %cst_12 [1] : vector<16x32xf32> to vector<16xf32>
    %41 = vector.shape_cast %40 : vector<16xf32> to vector<16x1xf32>
    %42 = arith.mulf %37, %37 : vector<16x32xf32>
    %cst_13 = arith.constant dense<0.000000e+00> : vector<16xf32>
    %43 = vector.multi_reduction <add>, %42, %cst_13 [1] : vector<16x32xf32> to vector<16xf32>
    %44 = vector.shape_cast %43 : vector<16xf32> to vector<16x1xf32>
    %45 = tpu.transpose %44, [1, 0] : vector<16x1xf32> -> vector<1x16xf32>
    %46 = vector.broadcast %41 : vector<16x1xf32> to vector<16x16xf32>
    %47 = vector.broadcast %45 : vector<1x16xf32> to vector<16x16xf32>
    %48 = arith.addf %46, %47 : vector<16x16xf32>
    %cst_14 = arith.constant 2.000000e+00 : f32
    %49 = vector.broadcast %cst_14 : f32 to vector<16x16xf32>
    %50 = arith.mulf %49, %38 : vector<16x16xf32>
    %51 = arith.subf %48, %50 : vector<16x16xf32>
    %cst_15 = arith.constant 0.000000e+00 : f32
    %52 = vector.broadcast %cst_15 : f32 to vector<16x16xf32>
    %53 = arith.maximumf %51, %52 : vector<16x16xf32>
    %54 = math.sqrt %53 : vector<16x16xf32>
    %cst_16 = arith.constant 1.000000e+00 : f32
    %55 = vector.broadcast %cst_16 : f32 to vector<16x16xf32>
    %56 = arith.addf %55, %54 : vector<16x16xf32>
    %57 = arith.divf %21, %56 : vector<16x16xf32>
    %cst_17 = arith.constant dense<0.000000e+00> : vector<16x32xf32>
    %58 = tpu.matmul %57, %30, %cst_17 {dimension_numbers = #tpu.dot_dimension_numbers<[1], [0], [0], [1], [0, 0, 1, 1], [], []>} : vector<16x16xf32>, vector<16x32xf32>, vector<16x32xf32> -> vector<16x32xf32>
    %59 = tpu.transpose %57, [1, 0] : vector<16x16xf32> -> vector<16x16xf32>
    %cst_18 = arith.constant dense<0.000000e+00> : vector<16x32xf32>
    %60 = tpu.matmul %59, %30, %cst_18 {dimension_numbers = #tpu.dot_dimension_numbers<[1], [0], [0], [1], [0, 0, 1, 1], [], []>} : vector<16x16xf32>, vector<16x32xf32>, vector<16x32xf32> -> vector<16x32xf32>
    %61 = vector.extract_strided_slice %58 {offsets = [0, 0], sizes = [8, 32], strides = [1, 1]} : vector<16x32xf32> to vector<8x32xf32>
    %62 = vector.extract_strided_slice %58 {offsets = [8, 0], sizes = [8, 32], strides = [1, 1]} : vector<16x32xf32> to vector<8x32xf32>
    %63 = vector.extract_strided_slice %60 {offsets = [0, 0], sizes = [8, 32], strides = [1, 1]} : vector<16x32xf32> to vector<8x32xf32>
    %64 = vector.extract_strided_slice %60 {offsets = [8, 0], sizes = [8, 32], strides = [1, 1]} : vector<16x32xf32> to vector<8x32xf32>
    %65 = tpu.concatenate %61, %62, %63, %64 in 1 : vector<8x32xf32>, vector<8x32xf32>, vector<8x32xf32>, vector<8x32xf32> -> vector<8x128xf32>
    %66 = vector.extract_strided_slice %0 {offsets = [0, 0], sizes = [8, 127], strides = [1, 1]} : vector<8x128xf32> to vector<8x127xf32>
    %67 = tpu.concatenate %23, %66 in 1 : vector<8x1xf32>, vector<8x127xf32> -> vector<8x128xf32>
    %68 = arith.mulf %67, %7 : vector<8x128xf32>
    %69 = vector.extract_strided_slice %0 {offsets = [0, 1], sizes = [8, 127], strides = [1, 1]} : vector<8x128xf32> to vector<8x127xf32>
    %70 = tpu.concatenate %69, %23 in 1 : vector<8x127xf32>, vector<8x1xf32> -> vector<8x128xf32>
    %71 = arith.mulf %70, %12 : vector<8x128xf32>
    %c0_19 = arith.constant 0 : index
    %72 = memref.load %arg3[%c0_19] : memref<36xf32, #tpu.memory_space<smem>>
    %73 = vector.broadcast %72 : f32 to vector<8x128xf32>
    %74 = arith.mulf %73, %68 : vector<8x128xf32>
    %c1 = arith.constant 1 : index
    %75 = memref.load %arg3[%c1] : memref<36xf32, #tpu.memory_space<smem>>
    %76 = vector.broadcast %75 : f32 to vector<8x128xf32>
    %77 = arith.mulf %76, %0 : vector<8x128xf32>
    %78 = arith.addf %74, %77 : vector<8x128xf32>
    %c2 = arith.constant 2 : index
    %79 = memref.load %arg3[%c2] : memref<36xf32, #tpu.memory_space<smem>>
    %80 = vector.broadcast %79 : f32 to vector<8x128xf32>
    %81 = arith.mulf %80, %71 : vector<8x128xf32>
    %82 = arith.addf %78, %81 : vector<8x128xf32>
    %c3 = arith.constant 3 : index
    %83 = memref.load %arg3[%c3] : memref<36xf32, #tpu.memory_space<smem>>
    %84 = vector.broadcast %83 : f32 to vector<8x128xf32>
    %85 = arith.mulf %84, %68 : vector<8x128xf32>
    %c4 = arith.constant 4 : index
    %86 = memref.load %arg3[%c4] : memref<36xf32, #tpu.memory_space<smem>>
    %87 = vector.broadcast %86 : f32 to vector<8x128xf32>
    %88 = arith.mulf %87, %0 : vector<8x128xf32>
    %89 = arith.addf %85, %88 : vector<8x128xf32>
    %c5 = arith.constant 5 : index
    %90 = memref.load %arg3[%c5] : memref<36xf32, #tpu.memory_space<smem>>
    %91 = vector.broadcast %90 : f32 to vector<8x128xf32>
    %92 = arith.mulf %91, %71 : vector<8x128xf32>
    %93 = arith.addf %89, %92 : vector<8x128xf32>
    %c6 = arith.constant 6 : index
    %94 = memref.load %arg3[%c6] : memref<36xf32, #tpu.memory_space<smem>>
    %95 = vector.broadcast %94 : f32 to vector<8x128xf32>
    %96 = arith.mulf %95, %68 : vector<8x128xf32>
    %c7 = arith.constant 7 : index
    %97 = memref.load %arg3[%c7] : memref<36xf32, #tpu.memory_space<smem>>
    %98 = vector.broadcast %97 : f32 to vector<8x128xf32>
    %99 = arith.mulf %98, %0 : vector<8x128xf32>
    %100 = arith.addf %96, %99 : vector<8x128xf32>
    %c8 = arith.constant 8 : index
    %101 = memref.load %arg3[%c8] : memref<36xf32, #tpu.memory_space<smem>>
    %102 = vector.broadcast %101 : f32 to vector<8x128xf32>
    %103 = arith.mulf %102, %71 : vector<8x128xf32>
    %104 = arith.addf %100, %103 : vector<8x128xf32>
    %105 = vector.extract_strided_slice %82 {offsets = [0, 0], sizes = [7, 128], strides = [1, 1]} : vector<8x128xf32> to vector<7x128xf32>
    %106 = tpu.concatenate %22, %105 in 0 : vector<1x128xf32>, vector<7x128xf32> -> vector<8x128xf32>
    %107 = arith.addf %106, %93 : vector<8x128xf32>
    %108 = vector.extract_strided_slice %104 {offsets = [1, 0], sizes = [7, 128], strides = [1, 1]} : vector<8x128xf32> to vector<7x128xf32>
    %109 = tpu.concatenate %108, %22 in 0 : vector<7x128xf32>, vector<1x128xf32> -> vector<8x128xf32>
    %110 = arith.addf %107, %109 : vector<8x128xf32>
    %111 = vector.extract_strided_slice %65 {offsets = [0, 0], sizes = [8, 127], strides = [1, 1]} : vector<8x128xf32> to vector<8x127xf32>
    %112 = tpu.concatenate %23, %111 in 1 : vector<8x1xf32>, vector<8x127xf32> -> vector<8x128xf32>
    %113 = arith.mulf %112, %7 : vector<8x128xf32>
    %114 = vector.extract_strided_slice %65 {offsets = [0, 1], sizes = [8, 127], strides = [1, 1]} : vector<8x128xf32> to vector<8x127xf32>
    %115 = tpu.concatenate %114, %23 in 1 : vector<8x127xf32>, vector<8x1xf32> -> vector<8x128xf32>
    %116 = arith.mulf %115, %12 : vector<8x128xf32>
    %c9 = arith.constant 9 : index
    %117 = memref.load %arg3[%c9] : memref<36xf32, #tpu.memory_space<smem>>
    %118 = vector.broadcast %117 : f32 to vector<8x128xf32>
    %119 = arith.mulf %118, %113 : vector<8x128xf32>
    %c10 = arith.constant 10 : index
    %120 = memref.load %arg3[%c10] : memref<36xf32, #tpu.memory_space<smem>>
    %121 = vector.broadcast %120 : f32 to vector<8x128xf32>
    %122 = arith.mulf %121, %65 : vector<8x128xf32>
    %123 = arith.addf %119, %122 : vector<8x128xf32>
    %c11 = arith.constant 11 : index
    %124 = memref.load %arg3[%c11] : memref<36xf32, #tpu.memory_space<smem>>
    %125 = vector.broadcast %124 : f32 to vector<8x128xf32>
    %126 = arith.mulf %125, %116 : vector<8x128xf32>
    %127 = arith.addf %123, %126 : vector<8x128xf32>
    %c12 = arith.constant 12 : index
    %128 = memref.load %arg3[%c12] : memref<36xf32, #tpu.memory_space<smem>>
    %129 = vector.broadcast %128 : f32 to vector<8x128xf32>
    %130 = arith.mulf %129, %113 : vector<8x128xf32>
    %c13 = arith.constant 13 : index
    %131 = memref.load %arg3[%c13] : memref<36xf32, #tpu.memory_space<smem>>
    %132 = vector.broadcast %131 : f32 to vector<8x128xf32>
    %133 = arith.mulf %132, %65 : vector<8x128xf32>
    %134 = arith.addf %130, %133 : vector<8x128xf32>
    %c14 = arith.constant 14 : index
    %135 = memref.load %arg3[%c14] : memref<36xf32, #tpu.memory_space<smem>>
    %136 = vector.broadcast %135 : f32 to vector<8x128xf32>
    %137 = arith.mulf %136, %116 : vector<8x128xf32>
    %138 = arith.addf %134, %137 : vector<8x128xf32>
    %c15 = arith.constant 15 : index
    %139 = memref.load %arg3[%c15] : memref<36xf32, #tpu.memory_space<smem>>
    %140 = vector.broadcast %139 : f32 to vector<8x128xf32>
    %141 = arith.mulf %140, %113 : vector<8x128xf32>
    %c16 = arith.constant 16 : index
    %142 = memref.load %arg3[%c16] : memref<36xf32, #tpu.memory_space<smem>>
    %143 = vector.broadcast %142 : f32 to vector<8x128xf32>
    %144 = arith.mulf %143, %65 : vector<8x128xf32>
    %145 = arith.addf %141, %144 : vector<8x128xf32>
    %c17 = arith.constant 17 : index
    %146 = memref.load %arg3[%c17] : memref<36xf32, #tpu.memory_space<smem>>
    %147 = vector.broadcast %146 : f32 to vector<8x128xf32>
    %148 = arith.mulf %147, %116 : vector<8x128xf32>
    %149 = arith.addf %145, %148 : vector<8x128xf32>
    %150 = vector.extract_strided_slice %127 {offsets = [0, 0], sizes = [7, 128], strides = [1, 1]} : vector<8x128xf32> to vector<7x128xf32>
    %151 = tpu.concatenate %22, %150 in 0 : vector<1x128xf32>, vector<7x128xf32> -> vector<8x128xf32>
    %152 = arith.addf %151, %138 : vector<8x128xf32>
    %153 = vector.extract_strided_slice %149 {offsets = [1, 0], sizes = [7, 128], strides = [1, 1]} : vector<8x128xf32> to vector<7x128xf32>
    %154 = tpu.concatenate %153, %22 in 0 : vector<7x128xf32>, vector<1x128xf32> -> vector<8x128xf32>
    %155 = arith.addf %152, %154 : vector<8x128xf32>
    %156 = arith.addf %110, %155 : vector<8x128xf32>
    %c0_20 = arith.constant 0 : index
    %157 = memref.load %arg4[%c0_20] : memref<2xf32, #tpu.memory_space<smem>>
    %158 = vector.broadcast %157 : f32 to vector<8x128xf32>
    %159 = arith.addf %156, %158 : vector<8x128xf32>
    %160 = math.tanh %159 : vector<8x128xf32>
    %cst_21 = arith.constant dense<0.000000e+00> : vector<128xf32>
    %161 = vector.multi_reduction <add>, %160, %cst_21 [0] : vector<8x128xf32> to vector<128xf32>
    %162 = vector.shape_cast %161 : vector<128xf32> to vector<1x128xf32>
    %cst_22 = arith.constant 8.000000e+00 : f32
    %163 = vector.broadcast %cst_22 : f32 to vector<1x128xf32>
    %164 = arith.divf %162, %163 : vector<1x128xf32>
    %165 = arith.mulf %160, %1 : vector<8x128xf32>
    %166 = vector.extract_strided_slice %165 {offsets = [0, 0], sizes = [8, 32], strides = [1, 1]} : vector<8x128xf32> to vector<8x32xf32>
    %167 = vector.extract_strided_slice %165 {offsets = [0, 32], sizes = [8, 32], strides = [1, 1]} : vector<8x128xf32> to vector<8x32xf32>
    %168 = tpu.concatenate %166, %167 in 0 : vector<8x32xf32>, vector<8x32xf32> -> vector<16x32xf32>
    %169 = vector.extract_strided_slice %165 {offsets = [0, 64], sizes = [8, 32], strides = [1, 1]} : vector<8x128xf32> to vector<8x32xf32>
    %170 = vector.extract_strided_slice %165 {offsets = [0, 96], sizes = [8, 32], strides = [1, 1]} : vector<8x128xf32> to vector<8x32xf32>
    %171 = tpu.concatenate %169, %170 in 0 : vector<8x32xf32>, vector<8x32xf32> -> vector<16x32xf32>
    %cst_23 = arith.constant dense<0.000000e+00> : vector<16x16xf32>
    %172 = tpu.matmul %168, %171, %cst_23 {dimension_numbers = #tpu.dot_dimension_numbers<[1], [1], [0], [0], [0, 0, 1, 0], [], []>} : vector<16x32xf32>, vector<16x32xf32>, vector<16x16xf32> -> vector<16x16xf32>
    %173 = arith.mulf %168, %168 : vector<16x32xf32>
    %cst_24 = arith.constant dense<0.000000e+00> : vector<16xf32>
    %174 = vector.multi_reduction <add>, %173, %cst_24 [1] : vector<16x32xf32> to vector<16xf32>
    %175 = vector.shape_cast %174 : vector<16xf32> to vector<16x1xf32>
    %176 = arith.mulf %171, %171 : vector<16x32xf32>
    %cst_25 = arith.constant dense<0.000000e+00> : vector<16xf32>
    %177 = vector.multi_reduction <add>, %176, %cst_25 [1] : vector<16x32xf32> to vector<16xf32>
    %178 = vector.shape_cast %177 : vector<16xf32> to vector<16x1xf32>
    %179 = tpu.transpose %178, [1, 0] : vector<16x1xf32> -> vector<1x16xf32>
    %180 = vector.broadcast %175 : vector<16x1xf32> to vector<16x16xf32>
    %181 = vector.broadcast %179 : vector<1x16xf32> to vector<16x16xf32>
    %182 = arith.addf %180, %181 : vector<16x16xf32>
    %cst_26 = arith.constant 2.000000e+00 : f32
    %183 = vector.broadcast %cst_26 : f32 to vector<16x16xf32>
    %184 = arith.mulf %183, %172 : vector<16x16xf32>
    %185 = arith.subf %182, %184 : vector<16x16xf32>
    %cst_27 = arith.constant 0.000000e+00 : f32
    %186 = vector.broadcast %cst_27 : f32 to vector<16x16xf32>
    %187 = arith.maximumf %185, %186 : vector<16x16xf32>
    %188 = math.sqrt %187 : vector<16x16xf32>
    %cst_28 = arith.constant 1.000000e+00 : f32
    %189 = vector.broadcast %cst_28 : f32 to vector<16x16xf32>
    %190 = arith.addf %189, %188 : vector<16x16xf32>
    %191 = arith.divf %21, %190 : vector<16x16xf32>
    %cst_29 = arith.constant dense<0.000000e+00> : vector<16xf32>
    %192 = vector.multi_reduction <add>, %191, %cst_29 [1] : vector<16x16xf32> to vector<16xf32>
    %193 = vector.shape_cast %192 : vector<16xf32> to vector<16x1xf32>
    %cst_30 = arith.constant dense<0.000000e+00> : vector<16xf32>
    %194 = vector.multi_reduction <add>, %191, %cst_30 [0] : vector<16x16xf32> to vector<16xf32>
    %195 = vector.shape_cast %194 : vector<16xf32> to vector<1x16xf32>
    %196 = tpu.transpose %195, [1, 0] : vector<1x16xf32> -> vector<16x1xf32>
    %197 = vector.extract_strided_slice %160 {offsets = [0, 0], sizes = [8, 32], strides = [1, 1]} : vector<8x128xf32> to vector<8x32xf32>
    %198 = vector.extract_strided_slice %193 {offsets = [0, 0], sizes = [8, 1], strides = [1, 1]} : vector<16x1xf32> to vector<8x1xf32>
    %199 = vector.broadcast %198 : vector<8x1xf32> to vector<8x32xf32>
    %200 = arith.mulf %197, %199 : vector<8x32xf32>
    %201 = vector.extract_strided_slice %160 {offsets = [0, 32], sizes = [8, 32], strides = [1, 1]} : vector<8x128xf32> to vector<8x32xf32>
    %202 = vector.extract_strided_slice %193 {offsets = [8, 0], sizes = [8, 1], strides = [1, 1]} : vector<16x1xf32> to vector<8x1xf32>
    %203 = vector.broadcast %202 : vector<8x1xf32> to vector<8x32xf32>
    %204 = arith.mulf %201, %203 : vector<8x32xf32>
    %205 = vector.extract_strided_slice %160 {offsets = [0, 64], sizes = [8, 32], strides = [1, 1]} : vector<8x128xf32> to vector<8x32xf32>
    %206 = vector.extract_strided_slice %196 {offsets = [0, 0], sizes = [8, 1], strides = [1, 1]} : vector<16x1xf32> to vector<8x1xf32>
    %207 = vector.broadcast %206 : vector<8x1xf32> to vector<8x32xf32>
    %208 = arith.mulf %205, %207 : vector<8x32xf32>
    %209 = vector.extract_strided_slice %160 {offsets = [0, 96], sizes = [8, 32], strides = [1, 1]} : vector<8x128xf32> to vector<8x32xf32>
    %210 = vector.extract_strided_slice %196 {offsets = [8, 0], sizes = [8, 1], strides = [1, 1]} : vector<16x1xf32> to vector<8x1xf32>
    %211 = vector.broadcast %210 : vector<8x1xf32> to vector<8x32xf32>
    %212 = arith.mulf %209, %211 : vector<8x32xf32>
    %213 = tpu.concatenate %200, %204, %208, %212 in 1 : vector<8x32xf32>, vector<8x32xf32>, vector<8x32xf32>, vector<8x32xf32> -> vector<8x128xf32>
    %214 = vector.extract_strided_slice %213 {offsets = [0, 0], sizes = [7, 128], strides = [1, 1]} : vector<8x128xf32> to vector<7x128xf32>
    %215 = tpu.concatenate %22, %214 in 0 : vector<1x128xf32>, vector<7x128xf32> -> vector<8x128xf32>
    %216 = arith.addf %215, %213 : vector<8x128xf32>
    %217 = vector.extract_strided_slice %213 {offsets = [1, 0], sizes = [7, 128], strides = [1, 1]} : vector<8x128xf32> to vector<7x128xf32>
    %218 = tpu.concatenate %217, %22 in 0 : vector<7x128xf32>, vector<1x128xf32> -> vector<8x128xf32>
    %219 = arith.addf %216, %218 : vector<8x128xf32>
    %cst_31 = arith.constant 0.333333343 : f32
    %220 = vector.broadcast %cst_31 : f32 to vector<8x128xf32>
    %221 = arith.mulf %219, %220 : vector<8x128xf32>
    %222 = arith.addf %221, %0 : vector<8x128xf32>
    %c1_32 = arith.constant 1 : index
    %c0_33 = arith.constant 0 : index
    %c0_34 = arith.constant 0 : index
    %223 = vector.load %arg2[%c1_32, %c0_33, %c0_34] : memref<2x8x32xf32, #tpu.memory_space<vmem>>, vector<1x8x32xf32>
    %224 = vector.shape_cast %223 : vector<1x8x32xf32> to vector<8x32xf32>
    %225 = tpu.concatenate %224, %224 in 0 : vector<8x32xf32>, vector<8x32xf32> -> vector<16x32xf32>
    %226 = arith.mulf %222, %1 : vector<8x128xf32>
    %227 = vector.extract_strided_slice %226 {offsets = [0, 0], sizes = [8, 32], strides = [1, 1]} : vector<8x128xf32> to vector<8x32xf32>
    %228 = vector.extract_strided_slice %226 {offsets = [0, 32], sizes = [8, 32], strides = [1, 1]} : vector<8x128xf32> to vector<8x32xf32>
    %229 = tpu.concatenate %227, %228 in 0 : vector<8x32xf32>, vector<8x32xf32> -> vector<16x32xf32>
    %230 = vector.extract_strided_slice %226 {offsets = [0, 64], sizes = [8, 32], strides = [1, 1]} : vector<8x128xf32> to vector<8x32xf32>
    %231 = vector.extract_strided_slice %226 {offsets = [0, 96], sizes = [8, 32], strides = [1, 1]} : vector<8x128xf32> to vector<8x32xf32>
    %232 = tpu.concatenate %230, %231 in 0 : vector<8x32xf32>, vector<8x32xf32> -> vector<16x32xf32>
    %cst_35 = arith.constant dense<0.000000e+00> : vector<16x16xf32>
    %233 = tpu.matmul %229, %232, %cst_35 {dimension_numbers = #tpu.dot_dimension_numbers<[1], [1], [0], [0], [0, 0, 1, 0], [], []>} : vector<16x32xf32>, vector<16x32xf32>, vector<16x16xf32> -> vector<16x16xf32>
    %234 = arith.mulf %229, %229 : vector<16x32xf32>
    %cst_36 = arith.constant dense<0.000000e+00> : vector<16xf32>
    %235 = vector.multi_reduction <add>, %234, %cst_36 [1] : vector<16x32xf32> to vector<16xf32>
    %236 = vector.shape_cast %235 : vector<16xf32> to vector<16x1xf32>
    %237 = arith.mulf %232, %232 : vector<16x32xf32>
    %cst_37 = arith.constant dense<0.000000e+00> : vector<16xf32>
    %238 = vector.multi_reduction <add>, %237, %cst_37 [1] : vector<16x32xf32> to vector<16xf32>
    %239 = vector.shape_cast %238 : vector<16xf32> to vector<16x1xf32>
    %240 = tpu.transpose %239, [1, 0] : vector<16x1xf32> -> vector<1x16xf32>
    %241 = vector.broadcast %236 : vector<16x1xf32> to vector<16x16xf32>
    %242 = vector.broadcast %240 : vector<1x16xf32> to vector<16x16xf32>
    %243 = arith.addf %241, %242 : vector<16x16xf32>
    %cst_38 = arith.constant 2.000000e+00 : f32
    %244 = vector.broadcast %cst_38 : f32 to vector<16x16xf32>
    %245 = arith.mulf %244, %233 : vector<16x16xf32>
    %246 = arith.subf %243, %245 : vector<16x16xf32>
    %cst_39 = arith.constant 0.000000e+00 : f32
    %247 = vector.broadcast %cst_39 : f32 to vector<16x16xf32>
    %248 = arith.maximumf %246, %247 : vector<16x16xf32>
    %249 = math.sqrt %248 : vector<16x16xf32>
    %cst_40 = arith.constant 1.000000e+00 : f32
    %250 = vector.broadcast %cst_40 : f32 to vector<16x16xf32>
    %251 = arith.addf %250, %249 : vector<16x16xf32>
    %252 = arith.divf %21, %251 : vector<16x16xf32>
    %cst_41 = arith.constant dense<0.000000e+00> : vector<16x32xf32>
    %253 = tpu.matmul %252, %225, %cst_41 {dimension_numbers = #tpu.dot_dimension_numbers<[1], [0], [0], [1], [0, 0, 1, 1], [], []>} : vector<16x16xf32>, vector<16x32xf32>, vector<16x32xf32> -> vector<16x32xf32>
    %254 = tpu.transpose %252, [1, 0] : vector<16x16xf32> -> vector<16x16xf32>
    %cst_42 = arith.constant dense<0.000000e+00> : vector<16x32xf32>
    %255 = tpu.matmul %254, %225, %cst_42 {dimension_numbers = #tpu.dot_dimension_numbers<[1], [0], [0], [1], [0, 0, 1, 1], [], []>} : vector<16x16xf32>, vector<16x32xf32>, vector<16x32xf32> -> vector<16x32xf32>
    %256 = vector.extract_strided_slice %253 {offsets = [0, 0], sizes = [8, 32], strides = [1, 1]} : vector<16x32xf32> to vector<8x32xf32>
    %257 = vector.extract_strided_slice %253 {offsets = [8, 0], sizes = [8, 32], strides = [1, 1]} : vector<16x32xf32> to vector<8x32xf32>
    %258 = vector.extract_strided_slice %255 {offsets = [0, 0], sizes = [8, 32], strides = [1, 1]} : vector<16x32xf32> to vector<8x32xf32>
    %259 = vector.extract_strided_slice %255 {offsets = [8, 0], sizes = [8, 32], strides = [1, 1]} : vector<16x32xf32> to vector<8x32xf32>
    %260 = tpu.concatenate %256, %257, %258, %259 in 1 : vector<8x32xf32>, vector<8x32xf32>, vector<8x32xf32>, vector<8x32xf32> -> vector<8x128xf32>
    %261 = vector.extract_strided_slice %222 {offsets = [0, 0], sizes = [8, 127], strides = [1, 1]} : vector<8x128xf32> to vector<8x127xf32>
    %262 = tpu.concatenate %23, %261 in 1 : vector<8x1xf32>, vector<8x127xf32> -> vector<8x128xf32>
    %263 = arith.mulf %262, %7 : vector<8x128xf32>
    %264 = vector.extract_strided_slice %222 {offsets = [0, 1], sizes = [8, 127], strides = [1, 1]} : vector<8x128xf32> to vector<8x127xf32>
    %265 = tpu.concatenate %264, %23 in 1 : vector<8x127xf32>, vector<8x1xf32> -> vector<8x128xf32>
    %266 = arith.mulf %265, %12 : vector<8x128xf32>
    %c18 = arith.constant 18 : index
    %267 = memref.load %arg3[%c18] : memref<36xf32, #tpu.memory_space<smem>>
    %268 = vector.broadcast %267 : f32 to vector<8x128xf32>
    %269 = arith.mulf %268, %263 : vector<8x128xf32>
    %c19 = arith.constant 19 : index
    %270 = memref.load %arg3[%c19] : memref<36xf32, #tpu.memory_space<smem>>
    %271 = vector.broadcast %270 : f32 to vector<8x128xf32>
    %272 = arith.mulf %271, %222 : vector<8x128xf32>
    %273 = arith.addf %269, %272 : vector<8x128xf32>
    %c20 = arith.constant 20 : index
    %274 = memref.load %arg3[%c20] : memref<36xf32, #tpu.memory_space<smem>>
    %275 = vector.broadcast %274 : f32 to vector<8x128xf32>
    %276 = arith.mulf %275, %266 : vector<8x128xf32>
    %277 = arith.addf %273, %276 : vector<8x128xf32>
    %c21 = arith.constant 21 : index
    %278 = memref.load %arg3[%c21] : memref<36xf32, #tpu.memory_space<smem>>
    %279 = vector.broadcast %278 : f32 to vector<8x128xf32>
    %280 = arith.mulf %279, %263 : vector<8x128xf32>
    %c22 = arith.constant 22 : index
    %281 = memref.load %arg3[%c22] : memref<36xf32, #tpu.memory_space<smem>>
    %282 = vector.broadcast %281 : f32 to vector<8x128xf32>
    %283 = arith.mulf %282, %222 : vector<8x128xf32>
    %284 = arith.addf %280, %283 : vector<8x128xf32>
    %c23 = arith.constant 23 : index
    %285 = memref.load %arg3[%c23] : memref<36xf32, #tpu.memory_space<smem>>
    %286 = vector.broadcast %285 : f32 to vector<8x128xf32>
    %287 = arith.mulf %286, %266 : vector<8x128xf32>
    %288 = arith.addf %284, %287 : vector<8x128xf32>
    %c24 = arith.constant 24 : index
    %289 = memref.load %arg3[%c24] : memref<36xf32, #tpu.memory_space<smem>>
    %290 = vector.broadcast %289 : f32 to vector<8x128xf32>
    %291 = arith.mulf %290, %263 : vector<8x128xf32>
    %c25 = arith.constant 25 : index
    %292 = memref.load %arg3[%c25] : memref<36xf32, #tpu.memory_space<smem>>
    %293 = vector.broadcast %292 : f32 to vector<8x128xf32>
    %294 = arith.mulf %293, %222 : vector<8x128xf32>
    %295 = arith.addf %291, %294 : vector<8x128xf32>
    %c26 = arith.constant 26 : index
    %296 = memref.load %arg3[%c26] : memref<36xf32, #tpu.memory_space<smem>>
    %297 = vector.broadcast %296 : f32 to vector<8x128xf32>
    %298 = arith.mulf %297, %266 : vector<8x128xf32>
    %299 = arith.addf %295, %298 : vector<8x128xf32>
    %300 = vector.extract_strided_slice %277 {offsets = [0, 0], sizes = [7, 128], strides = [1, 1]} : vector<8x128xf32> to vector<7x128xf32>
    %301 = tpu.concatenate %22, %300 in 0 : vector<1x128xf32>, vector<7x128xf32> -> vector<8x128xf32>
    %302 = arith.addf %301, %288 : vector<8x128xf32>
    %303 = vector.extract_strided_slice %299 {offsets = [1, 0], sizes = [7, 128], strides = [1, 1]} : vector<8x128xf32> to vector<7x128xf32>
    %304 = tpu.concatenate %303, %22 in 0 : vector<7x128xf32>, vector<1x128xf32> -> vector<8x128xf32>
    %305 = arith.addf %302, %304 : vector<8x128xf32>
    %306 = vector.extract_strided_slice %260 {offsets = [0, 0], sizes = [8, 127], strides = [1, 1]} : vector<8x128xf32> to vector<8x127xf32>
    %307 = tpu.concatenate %23, %306 in 1 : vector<8x1xf32>, vector<8x127xf32> -> vector<8x128xf32>
    %308 = arith.mulf %307, %7 : vector<8x128xf32>
    %309 = vector.extract_strided_slice %260 {offsets = [0, 1], sizes = [8, 127], strides = [1, 1]} : vector<8x128xf32> to vector<8x127xf32>
    %310 = tpu.concatenate %309, %23 in 1 : vector<8x127xf32>, vector<8x1xf32> -> vector<8x128xf32>
    %311 = arith.mulf %310, %12 : vector<8x128xf32>
    %c27 = arith.constant 27 : index
    %312 = memref.load %arg3[%c27] : memref<36xf32, #tpu.memory_space<smem>>
    %313 = vector.broadcast %312 : f32 to vector<8x128xf32>
    %314 = arith.mulf %313, %308 : vector<8x128xf32>
    %c28 = arith.constant 28 : index
    %315 = memref.load %arg3[%c28] : memref<36xf32, #tpu.memory_space<smem>>
    %316 = vector.broadcast %315 : f32 to vector<8x128xf32>
    %317 = arith.mulf %316, %260 : vector<8x128xf32>
    %318 = arith.addf %314, %317 : vector<8x128xf32>
    %c29 = arith.constant 29 : index
    %319 = memref.load %arg3[%c29] : memref<36xf32, #tpu.memory_space<smem>>
    %320 = vector.broadcast %319 : f32 to vector<8x128xf32>
    %321 = arith.mulf %320, %311 : vector<8x128xf32>
    %322 = arith.addf %318, %321 : vector<8x128xf32>
    %c30 = arith.constant 30 : index
    %323 = memref.load %arg3[%c30] : memref<36xf32, #tpu.memory_space<smem>>
    %324 = vector.broadcast %323 : f32 to vector<8x128xf32>
    %325 = arith.mulf %324, %308 : vector<8x128xf32>
    %c31 = arith.constant 31 : index
    %326 = memref.load %arg3[%c31] : memref<36xf32, #tpu.memory_space<smem>>
    %327 = vector.broadcast %326 : f32 to vector<8x128xf32>
    %328 = arith.mulf %327, %260 : vector<8x128xf32>
    %329 = arith.addf %325, %328 : vector<8x128xf32>
    %c32 = arith.constant 32 : index
    %330 = memref.load %arg3[%c32] : memref<36xf32, #tpu.memory_space<smem>>
    %331 = vector.broadcast %330 : f32 to vector<8x128xf32>
    %332 = arith.mulf %331, %311 : vector<8x128xf32>
    %333 = arith.addf %329, %332 : vector<8x128xf32>
    %c33 = arith.constant 33 : index
    %334 = memref.load %arg3[%c33] : memref<36xf32, #tpu.memory_space<smem>>
    %335 = vector.broadcast %334 : f32 to vector<8x128xf32>
    %336 = arith.mulf %335, %308 : vector<8x128xf32>
    %c34 = arith.constant 34 : index
    %337 = memref.load %arg3[%c34] : memref<36xf32, #tpu.memory_space<smem>>
    %338 = vector.broadcast %337 : f32 to vector<8x128xf32>
    %339 = arith.mulf %338, %260 : vector<8x128xf32>
    %340 = arith.addf %336, %339 : vector<8x128xf32>
    %c35 = arith.constant 35 : index
    %341 = memref.load %arg3[%c35] : memref<36xf32, #tpu.memory_space<smem>>
    %342 = vector.broadcast %341 : f32 to vector<8x128xf32>
    %343 = arith.mulf %342, %311 : vector<8x128xf32>
    %344 = arith.addf %340, %343 : vector<8x128xf32>
    %345 = vector.extract_strided_slice %322 {offsets = [0, 0], sizes = [7, 128], strides = [1, 1]} : vector<8x128xf32> to vector<7x128xf32>
    %346 = tpu.concatenate %22, %345 in 0 : vector<1x128xf32>, vector<7x128xf32> -> vector<8x128xf32>
    %347 = arith.addf %346, %333 : vector<8x128xf32>
    %348 = vector.extract_strided_slice %344 {offsets = [1, 0], sizes = [7, 128], strides = [1, 1]} : vector<8x128xf32> to vector<7x128xf32>
    %349 = tpu.concatenate %348, %22 in 0 : vector<7x128xf32>, vector<1x128xf32> -> vector<8x128xf32>
    %350 = arith.addf %347, %349 : vector<8x128xf32>
    %351 = arith.addf %305, %350 : vector<8x128xf32>
    %c1_43 = arith.constant 1 : index
    %352 = memref.load %arg4[%c1_43] : memref<2xf32, #tpu.memory_space<smem>>
    %353 = vector.broadcast %352 : f32 to vector<8x128xf32>
    %354 = arith.addf %351, %353 : vector<8x128xf32>
    %355 = math.tanh %354 : vector<8x128xf32>
    %cst_44 = arith.constant dense<0.000000e+00> : vector<128xf32>
    %356 = vector.multi_reduction <add>, %355, %cst_44 [0] : vector<8x128xf32> to vector<128xf32>
    %357 = vector.shape_cast %356 : vector<128xf32> to vector<1x128xf32>
    %cst_45 = arith.constant 8.000000e+00 : f32
    %358 = vector.broadcast %cst_45 : f32 to vector<1x128xf32>
    %359 = arith.divf %357, %358 : vector<1x128xf32>
    %360 = vector.extract_strided_slice %27 {offsets = [0, 0], sizes = [1, 32], strides = [1, 1]} : vector<1x128xf32> to vector<1x32xf32>
    %361 = vector.extract_strided_slice %164 {offsets = [0, 0], sizes = [1, 32], strides = [1, 1]} : vector<1x128xf32> to vector<1x32xf32>
    %362 = vector.extract_strided_slice %359 {offsets = [0, 0], sizes = [1, 32], strides = [1, 1]} : vector<1x128xf32> to vector<1x32xf32>
    %363 = vector.extract_strided_slice %27 {offsets = [0, 64], sizes = [1, 32], strides = [1, 1]} : vector<1x128xf32> to vector<1x32xf32>
    %364 = vector.extract_strided_slice %164 {offsets = [0, 64], sizes = [1, 32], strides = [1, 1]} : vector<1x128xf32> to vector<1x32xf32>
    %365 = vector.extract_strided_slice %359 {offsets = [0, 64], sizes = [1, 32], strides = [1, 1]} : vector<1x128xf32> to vector<1x32xf32>
    %366 = tpu.concatenate %360, %361, %362, %363, %364, %365 in 1 : vector<1x32xf32>, vector<1x32xf32>, vector<1x32xf32>, vector<1x32xf32>, vector<1x32xf32>, vector<1x32xf32> -> vector<1x192xf32>
    %367 = vector.extract_strided_slice %27 {offsets = [0, 32], sizes = [1, 32], strides = [1, 1]} : vector<1x128xf32> to vector<1x32xf32>
    %368 = vector.extract_strided_slice %164 {offsets = [0, 32], sizes = [1, 32], strides = [1, 1]} : vector<1x128xf32> to vector<1x32xf32>
    %369 = vector.extract_strided_slice %359 {offsets = [0, 32], sizes = [1, 32], strides = [1, 1]} : vector<1x128xf32> to vector<1x32xf32>
    %370 = vector.extract_strided_slice %27 {offsets = [0, 96], sizes = [1, 32], strides = [1, 1]} : vector<1x128xf32> to vector<1x32xf32>
    %371 = vector.extract_strided_slice %164 {offsets = [0, 96], sizes = [1, 32], strides = [1, 1]} : vector<1x128xf32> to vector<1x32xf32>
    %372 = vector.extract_strided_slice %359 {offsets = [0, 96], sizes = [1, 32], strides = [1, 1]} : vector<1x128xf32> to vector<1x32xf32>
    %373 = tpu.concatenate %367, %368, %369, %370, %371, %372 in 1 : vector<1x32xf32>, vector<1x32xf32>, vector<1x32xf32>, vector<1x32xf32>, vector<1x32xf32>, vector<1x32xf32> -> vector<1x192xf32>
    %374 = tpu.concatenate %366, %373 in 0 : vector<1x192xf32>, vector<1x192xf32> -> vector<2x192xf32>
    %c0_46 = arith.constant 0 : index
    %c0_47 = arith.constant 0 : index
    %375 = vector.load %arg5[%c0_46, %c0_47] : memref<192x64xf32, #tpu.memory_space<vmem>>, vector<192x64xf32>
    %cst_48 = arith.constant dense<0.000000e+00> : vector<2x64xf32>
    %376 = tpu.matmul %374, %375, %cst_48 {dimension_numbers = #tpu.dot_dimension_numbers<[1], [0], [0], [1], [0, 0, 1, 1], [], []>} : vector<2x192xf32>, vector<192x64xf32>, vector<2x64xf32> -> vector<2x64xf32>
    %c0_49 = arith.constant 0 : index
    %c0_50 = arith.constant 0 : index
    %377 = vector.load %arg6[%c0_49, %c0_50] : memref<1x64xf32, #tpu.memory_space<vmem>>, vector<1x64xf32>
    %378 = vector.broadcast %377 : vector<1x64xf32> to vector<2x64xf32>
    %379 = arith.addf %376, %378 : vector<2x64xf32>
    %cst_51 = arith.constant dense<0.000000e+00> : vector<2xf32>
    %380 = vector.multi_reduction <add>, %379, %cst_51 [1] : vector<2x64xf32> to vector<2xf32>
    %381 = vector.shape_cast %380 : vector<2xf32> to vector<2x1xf32>
    %cst_52 = arith.constant 6.400000e+01 : f32
    %382 = vector.broadcast %cst_52 : f32 to vector<2x1xf32>
    %383 = arith.divf %381, %382 : vector<2x1xf32>
    %384 = vector.broadcast %383 : vector<2x1xf32> to vector<2x64xf32>
    %385 = arith.subf %379, %384 : vector<2x64xf32>
    %386 = vector.broadcast %383 : vector<2x1xf32> to vector<2x64xf32>
    %387 = arith.subf %379, %386 : vector<2x64xf32>
    %388 = arith.mulf %385, %387 : vector<2x64xf32>
    %cst_53 = arith.constant dense<0.000000e+00> : vector<2xf32>
    %389 = vector.multi_reduction <add>, %388, %cst_53 [1] : vector<2x64xf32> to vector<2xf32>
    %390 = vector.shape_cast %389 : vector<2xf32> to vector<2x1xf32>
    %cst_54 = arith.constant 6.400000e+01 : f32
    %391 = vector.broadcast %cst_54 : f32 to vector<2x1xf32>
    %392 = arith.divf %390, %391 : vector<2x1xf32>
    %393 = vector.broadcast %383 : vector<2x1xf32> to vector<2x64xf32>
    %394 = arith.subf %379, %393 : vector<2x64xf32>
    %cst_55 = arith.constant 9.99999974E-6 : f32
    %395 = vector.broadcast %cst_55 : f32 to vector<2x1xf32>
    %396 = arith.addf %392, %395 : vector<2x1xf32>
    %397 = math.rsqrt %396 : vector<2x1xf32>
    %398 = vector.broadcast %397 : vector<2x1xf32> to vector<2x64xf32>
    %399 = arith.mulf %394, %398 : vector<2x64xf32>
    %c0_56 = arith.constant 0 : index
    %c0_57 = arith.constant 0 : index
    %400 = vector.load %arg7[%c0_56, %c0_57] : memref<1x64xf32, #tpu.memory_space<vmem>>, vector<1x64xf32>
    %401 = vector.broadcast %400 : vector<1x64xf32> to vector<2x64xf32>
    %402 = arith.mulf %399, %401 : vector<2x64xf32>
    %c0_58 = arith.constant 0 : index
    %c0_59 = arith.constant 0 : index
    %403 = vector.load %arg8[%c0_58, %c0_59] : memref<1x64xf32, #tpu.memory_space<vmem>>, vector<1x64xf32>
    %404 = vector.broadcast %403 : vector<1x64xf32> to vector<2x64xf32>
    %405 = arith.addf %402, %404 : vector<2x64xf32>
    %cst_60 = arith.constant 0.000000e+00 : f32
    %406 = vector.broadcast %cst_60 : f32 to vector<2x64xf32>
    %407 = arith.maximumf %405, %406 : vector<2x64xf32>
    %c0_61 = arith.constant 0 : index
    %c0_62 = arith.constant 0 : index
    %408 = vector.load %arg9[%c0_61, %c0_62] : memref<64x4xf32, #tpu.memory_space<vmem>>, vector<64x4xf32>
    %cst_63 = arith.constant dense<0.000000e+00> : vector<2x4xf32>
    %409 = tpu.matmul %407, %408, %cst_63 {dimension_numbers = #tpu.dot_dimension_numbers<[1], [0], [0], [1], [0, 0, 1, 1], [], []>} : vector<2x64xf32>, vector<64x4xf32>, vector<2x4xf32> -> vector<2x4xf32>
    %c0_64 = arith.constant 0 : index
    %c0_65 = arith.constant 0 : index
    %410 = vector.load %arg10[%c0_64, %c0_65] : memref<1x4xf32, #tpu.memory_space<vmem>>, vector<1x4xf32>
    %411 = vector.broadcast %410 : vector<1x4xf32> to vector<2x4xf32>
    %412 = arith.addf %409, %411 : vector<2x4xf32>
    %c0_66 = arith.constant 0 : index
    %c0_67 = arith.constant 0 : index
    %413 = vector.load %arg11[%c0_66, %c0_67] : memref<2x4xf32, #tpu.memory_space<vmem>>, vector<2x4xf32>
    tpu.vector_store %arg11[%c0_66, %c0_67], %412 {strides = array<i32>} : memref<2x4xf32, #tpu.memory_space<vmem>>, vector<2x4xf32>,
    return
  }
}

</mosaic_0001>

<llo_original>
// kernel: abcnn_forward.1
$region0: #{abcnn_forward.1}
  #allocation0 [shape = 'u32[]', space=smem, size = 0x4, offset = 0x4, fixed_abs, tag = 'smem constant byte address 0x4 - core index']
  #allocation1 [shape = 'u32[144,128]{1,0:T(1,128)}', space=vmem, size = 0x12000, scoped, tag = 'internal scratch']
  %s0 = inlined_call_operand.vmem [shape: f32[8,128], index: 0, kind: input, shape index: {}]
  %s1 = inlined_call_operand.vmem [shape: f32[8,128], index: 1, kind: input, shape index: {}]
  %s2 = inlined_call_operand.vmem [shape: f32[2,8,32], index: 2, kind: input, shape index: {}]
  %s3 = inlined_call_operand.vmem [shape: f32[36], index: 3, kind: input, shape index: {}]
  %s4 = inlined_call_operand.vmem [shape: f32[2], index: 4, kind: input, shape index: {}]
  %s5 = inlined_call_operand.vmem [shape: f32[192,64], index: 5, kind: input, shape index: {}]
  %s6 = inlined_call_operand.vmem [shape: f32[1,64], index: 6, kind: input, shape index: {}]
  %s7 = inlined_call_operand.vmem [shape: f32[1,64], index: 7, kind: input, shape index: {}]
  %s8 = inlined_call_operand.vmem [shape: f32[1,64], index: 8, kind: input, shape index: {}]
  %s9 = inlined_call_operand.vmem [shape: f32[64,4], index: 9, kind: input, shape index: {}]
  %s10 = inlined_call_operand.vmem [shape: f32[1,4], index: 10, kind: input, shape index: {}]
  %s11 = inlined_call_operand.vmem [shape: f32[2,4], index: 11, kind: output, shape index: {}]
  %s12 = sld [smem:[#allocation0]]
  $region62: #{abcnn_forward.1} parent=0
    _
  %s14 = ssub.s32 1, %s12
  %s15 = scalar_select 0, %s14, %s12
  $region1: #{abcnn_forward.1} parent=0
    #allocation2 [shape = 'u8[512]{0}', space=smem, size = 0x200, scoped, tag = 'input window, operand 3, single buffered']
    #allocation3 [shape = 's32[1]{0}', space=sflag, size = 0x4, scoped, tag = 'scoped memory for abcnn_forward.1']
    #allocation4 [shape = 'u8[512]{0}', space=smem, size = 0x200, scoped, tag = 'input window, operand 4, single buffered']
    #allocation5 [shape = 's32[1]{0}', space=sflag, size = 0x4, scoped, tag = 'scoped memory for abcnn_forward.1']
    %16 = vsyncpa [#allocation3], 0
    %17 = vsyncpa [#allocation5], 0
    // Predicated region
    $region2: #{abcnn_forward.1} parent=1 // pred_check
      _
    $region3: #{abcnn_forward.1} parent=1 // pred_check_branch
      %19 = sbr.rel (0) target = $region5
    $region4: #{abcnn_forward.1} parent=1 // pred_region
      _
    $region5: #{abcnn_forward.1} parent=1 // pred_fallthru
      _
    // Predicated region
    $region6: #{abcnn_forward.1} parent=1 // pred_check
      _
    $region7: #{abcnn_forward.1} parent=1 // pred_check_branch
      %21 = sbr.rel (0) target = $region9
    $region8: #{abcnn_forward.1} parent=1 // pred_region
      _
    $region9: #{abcnn_forward.1} parent=1 // pred_fallthru
      _
    // Predicated region
    $region10: #{abcnn_forward.1} parent=1 // pred_check
      _
    $region11: #{abcnn_forward.1} parent=1 // pred_check_branch
      %23 = sbr.rel (0) target = $region13
    $region12: #{abcnn_forward.1} parent=1 // pred_region
      _
    $region13: #{abcnn_forward.1} parent=1 // pred_fallthru
      _
    // Predicated region
    $region14: #{abcnn_forward.1} parent=1 // pred_check
      _
    $region15: #{abcnn_forward.1} parent=1 // pred_check_branch
      %25 = sbr.rel (0) target = $region17
    $region16: #{abcnn_forward.1} parent=1 // pred_region
      %s27 = ssub.s32 16, 16
      %28 = vsyncadd [#allocation3], %s27
      %s30 = sshll.u32 %s3, 4
      %s31 = int_to_ptr.vmem [resolvable:$true] %s30
      %33 = dma.vmem_to_smem %s31, 16, [#allocation2], [#allocation3]
    $region17: #{abcnn_forward.1} parent=1 // pred_fallthru
      _
    // Predicated region
    $region18: #{abcnn_forward.1} parent=1 // pred_check
      _
    $region19: #{abcnn_forward.1} parent=1 // pred_check_branch
      %35 = sbr.rel (0) target = $region21
    $region20: #{abcnn_forward.1} parent=1 // pred_region
      %s37 = ssub.s32 16, 16
      %38 = vsyncadd [#allocation5], %s37
      %s40 = sshll.u32 %s4, 4
      %s41 = int_to_ptr.vmem [resolvable:$true] %s40
      %43 = dma.vmem_to_smem %s41, 16, [#allocation4], [#allocation5]
    $region21: #{abcnn_forward.1} parent=1 // pred_fallthru
      _
    // Predicated region
    $region22: #{abcnn_forward.1} parent=1 // pred_check
      _
    $region23: #{abcnn_forward.1} parent=1 // pred_check_branch
      %45 = sbr.rel (0) target = $region25
    $region24: #{abcnn_forward.1} parent=1 // pred_region
      _
    $region25: #{abcnn_forward.1} parent=1 // pred_fallthru
      _
    // Predicated region
    $region26: #{abcnn_forward.1} parent=1 // pred_check
      _
    $region27: #{abcnn_forward.1} parent=1 // pred_check_branch
      %47 = sbr.rel (0) target = $region29
    $region28: #{abcnn_forward.1} parent=1 // pred_region
      _
    $region29: #{abcnn_forward.1} parent=1 // pred_fallthru
      _
    // Predicated region
    $region30: #{abcnn_forward.1} parent=1 // pred_check
      _
    $region31: #{abcnn_forward.1} parent=1 // pred_check_branch
      %49 = sbr.rel (0) target = $region33
    $region32: #{abcnn_forward.1} parent=1 // pred_region
      _
    $region33: #{abcnn_forward.1} parent=1 // pred_fallthru
      _
    // Predicated region
    $region34: #{abcnn_forward.1} parent=1 // pred_check
      _
    $region35: #{abcnn_forward.1} parent=1 // pred_check_branch
      %51 = sbr.rel (0) target = $region37
    $region36: #{abcnn_forward.1} parent=1 // pred_region
      _
    $region37: #{abcnn_forward.1} parent=1 // pred_fallthru
      _
    // Predicated region
    $region38: #{abcnn_forward.1} parent=1 // pred_check
      _
    $region39: #{abcnn_forward.1} parent=1 // pred_check_branch
      %53 = sbr.rel (0) target = $region41
    $region40: #{abcnn_forward.1} parent=1 // pred_region
      _
    $region41: #{abcnn_forward.1} parent=1 // pred_fallthru
      _
    // Predicated region
    $region42: #{abcnn_forward.1} parent=1 // pred_check
      _
    $region43: #{abcnn_forward.1} parent=1 // pred_check_branch
      %55 = sbr.rel (0) target = $region45
    $region44: #{abcnn_forward.1} parent=1 // pred_region
      _
    $region45: #{abcnn_forward.1} parent=1 // pred_fallthru
      _
    // Predicated region
    $region46: #{abcnn_forward.1} parent=1 // pred_check
      _
    $region47: #{abcnn_forward.1} parent=1 // pred_check_branch
      %57 = sbr.rel (0) target = $region49
    $region48: #{abcnn_forward.1} parent=1 // pred_region
      %58 = dma.done [#allocation3], 16
    $region49: #{abcnn_forward.1} parent=1 // pred_fallthru
      _
    // Predicated region
    $region50: #{abcnn_forward.1} parent=1 // pred_check
      _
    $region51: #{abcnn_forward.1} parent=1 // pred_check_branch
      %60 = sbr.rel (0) target = $region53
    $region52: #{abcnn_forward.1} parent=1 // pred_region
      %61 = dma.done [#allocation5], 16
    $region53: #{abcnn_forward.1} parent=1 // pred_fallthru
      _
    %62 = sfence
    %v63 = vld [vmem:[%s0] sm:$0xff]
    %v64 = vld [vmem:[%s1] sm:$0xff]
    %v65 = vlaneseq
    %v66 = vand.u32 %v65, 127
    %vm67 = vcmp.ne.s32.totalorder %v66, 0
    %v68 = vsel %vm67, 1, 0
    %v69 = vcvt.s32.f32 %v68
    %71 = vrot.lane.b32.xlu0 %v69, 32
    %v72 = vpop.permute.xlu0 %71
    %74 = vrot.lane.b32.xlu0 %v69, 64
    %v75 = vpop.permute.xlu0 %74
    %77 = vrot.lane.b32.xlu0 %v69, 96
    %v78 = vpop.permute.xlu0 %77
    %vm80 = vcmask 261120
    %v81 = vsel %vm80, %v69, %v72
    %vm82 = vcmask 523264
    %v83 = vsel %vm82, %v81, %v75
    %vm84 = vcmask 785408
    %v85 = vsel %vm84, %v83, %v78
    %vm86 = vcmp.ne.s32.totalorder %v66, 31
    %v87 = vsel %vm86, 1, 0
    %v88 = vcvt.s32.f32 %v87
    %90 = vrot.lane.b32.xlu0 %v88, 32
    %v91 = vpop.permute.xlu0 %90
    %93 = vrot.lane.b32.xlu0 %v88, 64
    %v94 = vpop.permute.xlu0 %93
    %96 = vrot.lane.b32.xlu0 %v88, 96
    %v97 = vpop.permute.xlu0 %96
    %v99 = vsel %vm80, %v88, %v91
    %v100 = vsel %vm82, %v99, %v94
    %v101 = vsel %vm84, %v100, %v97
    %102 = vxpose.xlu0.b32.start [1/16] 0.0, 128
    %103 = vxpose.xlu0.b32.cont [2/16] 1.0, 128
    %104 = vxpose.xlu0.b32.cont [3/16] 0.0, 128
    %105 = vxpose.xlu0.b32.cont [4/16] 0.0, 128
    %106 = vxpose.xlu0.b32.cont [5/16] 0.0, 128
    %107 = vxpose.xlu0.b32.cont [6/16] 0.0, 128
    %108 = vxpose.xlu0.b32.cont [7/16] 0.0, 128
    %109 = vxpose.xlu0.b32.cont [8/16] 0.0, 128
    %110 = vxpose.xlu0.b32.cont [9/16] 0.0, 128
    %111 = vxpose.xlu0.b32.cont [10/16] 0.0, 128
    %112 = vxpose.xlu0.b32.cont [11/16] 0.0, 128
    %113 = vxpose.xlu0.b32.cont [12/16] 0.0, 128
    %114 = vxpose.xlu0.b32.cont [13/16] 0.0, 128
    %115 = vxpose.xlu0.b32.cont [14/16] 0.0, 128
    %116 = vxpose.xlu0.b32.cont [15/16] 0.0, 128
    %117 = vxpose.xlu0.b32.end [16/16] 0.0, 128
    %v118 = vpop.trf.xlu0
    %v119 = vpop.trf.xlu0
    %v120 = vpop.trf.xlu0
    %v121 = vpop.trf.xlu0
    %v122 = vpop.trf.xlu0
    %v123 = vpop.trf.xlu0
    %v124 = vpop.trf.xlu0
    %v125 = vpop.trf.xlu0
    %v126 = vpop.trf.xlu0
    %v127 = vpop.trf.xlu0
    %v128 = vpop.trf.xlu0
    %v129 = vpop.trf.xlu0
    %v130 = vpop.trf.xlu0
    %v131 = vpop.trf.xlu0
    %v132 = vpop.trf.xlu0
    %v133 = vpop.trf.xlu0
    %135 = vset.pattern.permute.xlu0 0
    %136 = vperm.xlu0 %135, 0.0
    %v137 = vpop.permute.xlu0 %136
    %140 = vset.pattern.permute.xlu0 0
    %141 = vperm.xlu0 %140, 1.0
    %v142 = vpop.permute.xlu0 %141
    %v144 = vlaneseq
    %v145 = vshrl.u32 %v144, 7
    %v146 = vsub.s32 0, %v145
    %v147 = vrot.slane %v118, %v146
    %vm148 = vcmp.eq.f32.partialorder %v137, %v147
    %vm149 = vcmp.eq.f32.partialorder %v142, %v147
    %v150 = vsel %vm148, 1, 0
    %v151 = vsel %vm149, 1, 0
    %v152 = vcvt.s32.f32 %v150
    %v153 = vcvt.s32.f32 %v151
    %v154 = vrot.slane %v63, 4
    %v155 = vadd.f32 %v63, %v154
    %v156 = vrot.slane %v155, 2
    %v157 = vadd.f32 %v155, %v156
    %v158 = vrot.slane %v157, 1
    %v159 = vadd.f32 %v157, %v158
    %v160 = vrcp.pop 8.0
    %v161 = vmul.f32 %v159, %v160
    %v162 = vld [vmem:[%s2] sm:$0xff]
    %v163 = vmul.f32 %v63, %v64
    %165 = vrot.lane.b32.xlu0 %v163, 96
    %v166 = vpop.permute.xlu0 %165
    %168 = vrot.lane.b32.xlu0 %v163, 64
    %v169 = vpop.permute.xlu0 %168
    %170 = vrot.lane.b32.xlu0 %v166, 64
    %v171 = vpop.permute.xlu0 %170
    %v172 = vsel %vm80, %v163, 0
    %v174 = vsel %vm80, %v166, 0
    %v176 = vsel %vm80, %v169, 0
    %v178 = vsel %vm80, %v171, 0
    %180 = vmatprep.subr.mxu0 0.0
    %181 = vmatpush1.xpose.msra.mxu0 0.0
    %182 = vmatprep.subr.mxu0 0.0
    %183 = vmatpush1.xpose.msra.mxu0 0.0
    %184 = vmatprep.subr.mxu0 0.0
    %185 = vmatpush1.xpose.msra.mxu0 0.0
    %186 = vmatprep.subr.mxu0 0.0
    %187 = vmatpush1.xpose.msra.mxu0 0.0
    %188 = vmatprep.subr.mxu0 0.0
    %189 = vmatpush1.xpose.msra.mxu0 0.0
    %190 = vmatprep.subr.mxu0 0.0
    %191 = vmatpush1.xpose.msra.mxu0 0.0
    %192 = vmatprep.subr.mxu0 0.0
    %193 = vmatpush1.xpose.msra.mxu0 0.0
    %194 = vmatprep.subr.mxu0 0.0
    %195 = vmatpush1.xpose.msra.mxu0 0.0
    %196 = vmatprep.subr.mxu0 0.0
    %197 = vmatpush1.xpose.msra.mxu0 0.0
    %198 = vmatprep.subr.mxu0 0.0
    %199 = vmatpush1.xpose.msra.mxu0 0.0
    %200 = vmatprep.subr.mxu0 0.0
    %201 = vmatpush1.xpose.msra.mxu0 0.0
    %202 = vmatprep.subr.mxu0 0.0
    %203 = vmatpush1.xpose.msra.mxu0 0.0
    %204 = vmatprep.subr.mxu0 0.0
    %205 = vmatpush1.xpose.msra.mxu0 0.0
    %206 = vmatprep.subr.mxu0 0.0
    %207 = vmatpush1.xpose.msra.mxu0 0.0
    %208 = vmatprep.subr.mxu0 0.0
    %209 = vmatpush1.xpose.msra.mxu0 %v178
    %210 = vmatprep.subr.mxu0 0.0
    %211 = vmatpush1.xpose.msra.mxu0 %v176
    %212 = vmatprep.subr.mxu0 0.0
    %213 = vmatpush2.xpose.msra.mxu0 0.0
    %214 = vmatprep.subr.mxu0 0.0
    %215 = vmatpush2.xpose.msra.mxu0 0.0
    %216 = vmatprep.subr.mxu0 0.0
    %217 = vmatpush2.xpose.msra.mxu0 0.0
    %218 = vmatprep.subr.mxu0 0.0
    %219 = vmatpush2.xpose.msra.mxu0 0.0
    %220 = vmatprep.subr.mxu0 0.0
    %221 = vmatpush2.xpose.msra.mxu0 0.0
    %222 = vmatprep.subr.mxu0 0.0
    %223 = vmatpush2.xpose.msra.mxu0 0.0
    %224 = vmatprep.subr.mxu0 0.0
    %225 = vmatpush2.xpose.msra.mxu0 0.0
    %226 = vmatprep.subr.mxu0 0.0
    %227 = vmatpush2.xpose.msra.mxu0 0.0
    %228 = vmatprep.subr.mxu0 0.0
    %229 = vmatpush2.xpose.msra.mxu0 0.0
    %230 = vmatprep.subr.mxu0 0.0
    %231 = vmatpush2.xpose.msra.mxu0 0.0
    %232 = vmatprep.subr.mxu0 0.0
    %233 = vmatpush2.xpose.msra.mxu0 0.0
    %234 = vmatprep.subr.mxu0 0.0
    %235 = vmatpush2.xpose.msra.mxu0 0.0
    %236 = vmatprep.subr.mxu0 0.0
    %237 = vmatpush2.xpose.msra.mxu0 0.0
    %238 = vmatprep.subr.mxu0 0.0
    %239 = vmatpush2.xpose.msra.mxu0 0.0
    %240 = vmatprep.subr.mxu0 0.0
    %241 = vmatpush2.xpose.msra.mxu0 0.0
    %242 = vmatprep.subr.mxu0 0.0
    %243 = vmatpush2.xpose.msra.mxu0 0.0
    %244 = vmatprep.mubr.f32.mxu0 0.0
    %245 = vmatmul.mubr.f32.gmra.mxu0 %v172
    %v246 = vpop.f32.mrf.mxu0
    %v247 = vadd.f32 0.0, %v246
    %v248 = vpop.f32.mrf.mxu0
    %249 = vmatprep.mubr.f32.mxu0 0.0
    %250 = vmatmul.mubr.f32.gmra.mxu0 %v174
    %v251 = vpop.f32.mrf.mxu0
    %v252 = vadd.f32 0.0, %v251
    %v253 = vpop.f32.mrf.mxu0
    %254 = vdwg.mxu0
    %v255 = vmul.f32 %v163, %v163
    %v256 = vmul.f32 %v166, %v166
    %v257 = vsel %vm80, %v255, 0.0
    %258 = vadd.xlane.f32.xlu0 %v257
    %v259 = vpop.xlane.xlu0 %258
    %v260 = vsel %vm80, %v256, 0.0
    %261 = vadd.xlane.f32.xlu0 %v260
    %v262 = vpop.xlane.xlu0 %261
    %265 = vrot.lane.b32.xlu0 %v255, 64
    %v266 = vpop.permute.xlu0 %265
    %267 = vrot.lane.b32.xlu0 %v256, 64
    %v268 = vpop.permute.xlu0 %267
    %v271 = vsel %vm80, %v266, 0.0
    %272 = vadd.xlane.f32.xlu0 %v271
    %v273 = vpop.xlane.xlu0 %272
    %v274 = vsel %vm80, %v268, 0.0
    %275 = vadd.xlane.f32.xlu0 %v274
    %v276 = vpop.xlane.xlu0 %275
    %277 = vxpose.xlu0.b32.start [1/16] %v273, 128
    %278 = vxpose.xlu0.b32.cont [2/16] %v276, 128
    %279 = vxpose.xlu0.b32.cont [3/16] 0.0, 128
    %280 = vxpose.xlu0.b32.cont [4/16] 0.0, 128
    %281 = vxpose.xlu0.b32.cont [5/16] 0.0, 128
    %282 = vxpose.xlu0.b32.cont [6/16] 0.0, 128
    %283 = vxpose.xlu0.b32.cont [7/16] 0.0, 128
    %284 = vxpose.xlu0.b32.cont [8/16] 0.0, 128
    %285 = vxpose.xlu0.b32.cont [9/16] 0.0, 128
    %286 = vxpose.xlu0.b32.cont [10/16] 0.0, 128
    %287 = vxpose.xlu0.b32.cont [11/16] 0.0, 128
    %288 = vxpose.xlu0.b32.cont [12/16] 0.0, 128
    %289 = vxpose.xlu0.b32.cont [13/16] 0.0, 128
    %290 = vxpose.xlu0.b32.cont [14/16] 0.0, 128
    %291 = vxpose.xlu0.b32.cont [15/16] 0.0, 128
    %292 = vxpose.xlu0.b32.end [16/16] 0.0, 128
    %v293 = vpop.trf.xlu0
    %v294 = vpop.trf.xlu0
    %v295 = vpop.trf.xlu0
    %v296 = vpop.trf.xlu0
    %v297 = vpop.trf.xlu0
    %v298 = vpop.trf.xlu0
    %v299 = vpop.trf.xlu0
    %v300 = vpop.trf.xlu0
    %v301 = vpop.trf.xlu0
    %v302 = vpop.trf.xlu0
    %v303 = vpop.trf.xlu0
    %v304 = vpop.trf.xlu0
    %v305 = vpop.trf.xlu0
    %v306 = vpop.trf.xlu0
    %v307 = vpop.trf.xlu0
    %v308 = vpop.trf.xlu0
    %v309 = vlaneseq
    %v310 = vshrl.u32 %v309, 7
    %v311 = vsub.s32 0, %v310
    %v312 = vrot.slane %v293, %v311
    %v313 = vadd.f32 %v259, %v312
    %v314 = vadd.f32 %v262, %v312
    %v315 = vmul.f32 %v247, 2.0
    %v316 = vmul.f32 %v252, 2.0
    %v317 = vsub.f32 %v313, %v315
    %v318 = vsub.f32 %v314, %v316
    %v319 = vmax.f32 %v317, 0.0
    %v320 = vmax.f32 %v318, 0.0
    %v321 = vrsqrt.pop %v319
    %v322 = vmul.f32 %v319, %v321
    %vm323 = vcmp.eq.f32.partialorder %v319, inf
    %v324 = vsel %vm323, %v319, %v322
    %vm325 = vcmp.eq.f32.partialorder %v319, 0.0
    %v326 = vand.u32 %v319, 2147483648
    %v327 = vsel %vm325, %v326, %v324
    %v328 = vrsqrt.pop %v320
    %v329 = vmul.f32 %v320, %v328
    %vm330 = vcmp.eq.f32.partialorder %v320, inf
    %v331 = vsel %vm330, %v320, %v329
    %vm332 = vcmp.eq.f32.partialorder %v320, 0.0
    %v333 = vand.u32 %v320, 2147483648
    %v334 = vsel %vm332, %v333, %v331
    %v335 = vadd.f32 %v327, 1.0
    %v336 = vadd.f32 %v334, 1.0
    %v337 = vrcp.pop %v335
    %v338 = vmul.f32 %v152, %v337
    %v339 = vrcp.pop %v336
    %v340 = vmul.f32 %v153, %v339
    %vm341 = vcmask 130048
    %v343 = vsel %vm341, %v338, 0
    %v346 = vsel %vm341, %v340, 0
    %348 = vmatprep.subr.mxu0 0.0
    %349 = vmatpush1.msra.mxu0 0.0
    %350 = vmatprep.subr.mxu0 0.0
    %351 = vmatpush1.msra.mxu0 0.0
    %352 = vmatprep.subr.mxu0 0.0
    %353 = vmatpush1.msra.mxu0 0.0
    %354 = vmatprep.subr.mxu0 0.0
    %355 = vmatpush1.msra.mxu0 0.0
    %356 = vmatprep.subr.mxu0 0.0
    %357 = vmatpush1.msra.mxu0 0.0
    %358 = vmatprep.subr.mxu0 0.0
    %359 = vmatpush1.msra.mxu0 0.0
    %360 = vmatprep.subr.mxu0 0.0
    %361 = vmatpush1.msra.mxu0 0.0
    %362 = vmatprep.subr.mxu0 0.0
    %363 = vmatpush1.msra.mxu0 0.0
    %364 = vmatprep.subr.mxu0 0.0
    %365 = vmatpush1.msra.mxu0 0.0
    %366 = vmatprep.subr.mxu0 0.0
    %367 = vmatpush1.msra.mxu0 0.0
    %368 = vmatprep.subr.mxu0 0.0
    %369 = vmatpush1.msra.mxu0 0.0
    %370 = vmatprep.subr.mxu0 0.0
    %371 = vmatpush1.msra.mxu0 0.0
    %372 = vmatprep.subr.mxu0 0.0
    %373 = vmatpush1.msra.mxu0 0.0
    %374 = vmatprep.subr.mxu0 0.0
    %375 = vmatpush1.msra.mxu0 0.0
    %376 = vmatprep.subr.mxu0 0.0
    %377 = vmatpush1.msra.mxu0 %v162
    %378 = vmatprep.subr.mxu0 0.0
    %379 = vmatpush1.msra.mxu0 %v162
    %380 = vmatprep.subr.mxu0 0.0
    %381 = vmatpush2.msra.mxu0 0.0
    %382 = vmatprep.subr.mxu0 0.0
    %383 = vmatpush2.msra.mxu0 0.0
    %384 = vmatprep.subr.mxu0 0.0
    %385 = vmatpush2.msra.mxu0 0.0
    %386 = vmatprep.subr.mxu0 0.0
    %387 = vmatpush2.msra.mxu0 0.0
    %388 = vmatprep.subr.mxu0 0.0
    %389 = vmatpush2.msra.mxu0 0.0
    %390 = vmatprep.subr.mxu0 0.0
    %391 = vmatpush2.msra.mxu0 0.0
    %392 = vmatprep.subr.mxu0 0.0
    %393 = vmatpush2.msra.mxu0 0.0
    %394 = vmatprep.subr.mxu0 0.0
    %395 = vmatpush2.msra.mxu0 0.0
    %396 = vmatprep.subr.mxu0 0.0
    %397 = vmatpush2.msra.mxu0 0.0
    %398 = vmatprep.subr.mxu0 0.0
    %399 = vmatpush2.msra.mxu0 0.0
    %400 = vmatprep.subr.mxu0 0.0
    %401 = vmatpush2.msra.mxu0 0.0
    %402 = vmatprep.subr.mxu0 0.0
    %403 = vmatpush2.msra.mxu0 0.0
    %404 = vmatprep.subr.mxu0 0.0
    %405 = vmatpush2.msra.mxu0 0.0
    %406 = vmatprep.subr.mxu0 0.0
    %407 = vmatpush2.msra.mxu0 0.0
    %408 = vmatprep.subr.mxu0 0.0
    %409 = vmatpush2.msra.mxu0 0.0
    %410 = vmatprep.subr.mxu0 0.0
    %411 = vmatpush2.msra.mxu0 0.0
    %412 = vmatprep.mubr.f32.mxu0 0.0
    %413 = vmatmul.mubr.f32.gmra.mxu0 %v343
    %v414 = vpop.f32.mrf.mxu0
    %v415 = vadd.f32 0.0, %v414
    %v416 = vpop.f32.mrf.mxu0
    %417 = vmatprep.mubr.f32.mxu0 0.0
    %418 = vmatmul.mubr.f32.gmra.mxu0 %v346
    %v419 = vpop.f32.mrf.mxu0
    %v420 = vadd.f32 0.0, %v419
    %v421 = vpop.f32.mrf.mxu0
    %422 = vdwg.mxu0
    %423 = vxpose.xlu0.b32.start [1/16] %v338, 128
    %424 = vxpose.xlu0.b32.cont [2/16] %v340, 128
    %425 = vxpose.xlu0.b32.cont [3/16] 0.0, 128
    %426 = vxpose.xlu0.b32.cont [4/16] 0.0, 128
    %427 = vxpose.xlu0.b32.cont [5/16] 0.0, 128
    %428 = vxpose.xlu0.b32.cont [6/16] 0.0, 128
    %429 = vxpose.xlu0.b32.cont [7/16] 0.0, 128
    %430 = vxpose.xlu0.b32.cont [8/16] 0.0, 128
    %431 = vxpose.xlu0.b32.cont [9/16] 0.0, 128
    %432 = vxpose.xlu0.b32.cont [10/16] 0.0, 128
    %433 = vxpose.xlu0.b32.cont [11/16] 0.0, 128
    %434 = vxpose.xlu0.b32.cont [12/16] 0.0, 128
    %435 = vxpose.xlu0.b32.cont [13/16] 0.0, 128
    %436 = vxpose.xlu0.b32.cont [14/16] 0.0, 128
    %437 = vxpose.xlu0.b32.cont [15/16] 0.0, 128
    %438 = vxpose.xlu0.b32.end [16/16] 0.0, 128
    %v439 = vpop.trf.xlu0
    %v440 = vpop.trf.xlu0
    %v441 = vpop.trf.xlu0
    %v442 = vpop.trf.xlu0
    %v443 = vpop.trf.xlu0
    %v444 = vpop.trf.xlu0
    %v445 = vpop.trf.xlu0
    %v446 = vpop.trf.xlu0
    %v447 = vpop.trf.xlu0
    %v448 = vpop.trf.xlu0
    %v449 = vpop.trf.xlu0
    %v450 = vpop.trf.xlu0
    %v451 = vpop.trf.xlu0
    %v452 = vpop.trf.xlu0
    %v453 = vpop.trf.xlu0
    %v454 = vpop.trf.xlu0
    %v456 = vsel %vm341, %v439, 0
    %v459 = vsel %vm341, %v440, 0
    %461 = vmatprep.subr.mxu0 0.0
    %462 = vmatpush1.msra.mxu0 0.0
    %463 = vmatprep.subr.mxu0 0.0
    %464 = vmatpush1.msra.mxu0 0.0
    %465 = vmatprep.subr.mxu0 0.0
    %466 = vmatpush1.msra.mxu0 0.0
    %467 = vmatprep.subr.mxu0 0.0
    %468 = vmatpush1.msra.mxu0 0.0
    %469 = vmatprep.subr.mxu0 0.0
    %470 = vmatpush1.msra.mxu0 0.0
    %471 = vmatprep.subr.mxu0 0.0
    %472 = vmatpush1.msra.mxu0 0.0
    %473 = vmatprep.subr.mxu0 0.0
    %474 = vmatpush1.msra.mxu0 0.0
    %475 = vmatprep.subr.mxu0 0.0
    %476 = vmatpush1.msra.mxu0 0.0
    %477 = vmatprep.subr.mxu0 0.0
    %478 = vmatpush1.msra.mxu0 0.0
    %479 = vmatprep.subr.mxu0 0.0
    %480 = vmatpush1.msra.mxu0 0.0
    %481 = vmatprep.subr.mxu0 0.0
    %482 = vmatpush1.msra.mxu0 0.0
    %483 = vmatprep.subr.mxu0 0.0
    %484 = vmatpush1.msra.mxu0 0.0
    %485 = vmatprep.subr.mxu0 0.0
    %486 = vmatpush1.msra.mxu0 0.0
    %487 = vmatprep.subr.mxu0 0.0
    %488 = vmatpush1.msra.mxu0 0.0
    %489 = vmatprep.subr.mxu0 0.0
    %490 = vmatpush1.msra.mxu0 %v162
    %491 = vmatprep.subr.mxu0 0.0
    %492 = vmatpush1.msra.mxu0 %v162
    %493 = vmatprep.subr.mxu0 0.0
    %494 = vmatpush2.msra.mxu0 0.0
    %495 = vmatprep.subr.mxu0 0.0
    %496 = vmatpush2.msra.mxu0 0.0
    %497 = vmatprep.subr.mxu0 0.0
    %498 = vmatpush2.msra.mxu0 0.0
    %499 = vmatprep.subr.mxu0 0.0
    %500 = vmatpush2.msra.mxu0 0.0
    %501 = vmatprep.subr.mxu0 0.0
    %502 = vmatpush2.msra.mxu0 0.0
    %503 = vmatprep.subr.mxu0 0.0
    %504 = vmatpush2.msra.mxu0 0.0
    %505 = vmatprep.subr.mxu0 0.0
    %506 = vmatpush2.msra.mxu0 0.0
    %507 = vmatprep.subr.mxu0 0.0
    %508 = vmatpush2.msra.mxu0 0.0
    %509 = vmatprep.subr.mxu0 0.0
    %510 = vmatpush2.msra.mxu0 0.0
    %511 = vmatprep.subr.mxu0 0.0
    %512 = vmatpush2.msra.mxu0 0.0
    %513 = vmatprep.subr.mxu0 0.0
    %514 = vmatpush2.msra.mxu0 0.0
    %515 = vmatprep.subr.mxu0 0.0
    %516 = vmatpush2.msra.mxu0 0.0
    %517 = vmatprep.subr.mxu0 0.0
    %518 = vmatpush2.msra.mxu0 0.0
    %519 = vmatprep.subr.mxu0 0.0
    %520 = vmatpush2.msra.mxu0 0.0
    %521 = vmatprep.subr.mxu0 0.0
    %522 = vmatpush2.msra.mxu0 0.0
    %523 = vmatprep.subr.mxu0 0.0
    %524 = vmatpush2.msra.mxu0 0.0
    %525 = vmatprep.mubr.f32.mxu0 0.0
    %526 = vmatmul.mubr.f32.gmra.mxu0 %v456
    %v527 = vpop.f32.mrf.mxu0
    %v528 = vadd.f32 0.0, %v527
    %v529 = vpop.f32.mrf.mxu0
    %530 = vmatprep.mubr.f32.mxu0 0.0
    %531 = vmatmul.mubr.f32.gmra.mxu0 %v459
    %v532 = vpop.f32.mrf.mxu0
    %v533 = vadd.f32 0.0, %v532
    %v534 = vpop.f32.mrf.mxu0
    %535 = vdwg.mxu0
    %537 = vrot.lane.b32.xlu0 %v420, 32
    %v538 = vpop.permute.xlu0 %537
    %541 = vrot.lane.b32.xlu0 %v528, 64
    %v542 = vpop.permute.xlu0 %541
    %545 = vrot.lane.b32.xlu0 %v533, 96
    %v546 = vpop.permute.xlu0 %545
    %v548 = vsel %vm80, %v415, %v538
    %v549 = vsel %vm82, %v548, %v542
    %v550 = vsel %vm84, %v549, %v546
    %552 = vrot.lane.b32.xlu0 %v63, 1
    %v553 = vpop.permute.xlu0 %552
    %vm555 = vcmask 7168
    %v556 = vsel %vm555, 0.0, %v553
    %v557 = vmul.f32 %v556, %v85
    %558 = vrot.lane.b32.xlu0 %v63, 127
    %v559 = vpop.permute.xlu0 %558
    %vm561 = vcmask 1039360
    %v562 = vsel %vm561, %v559, 0.0
    %v563 = vmul.f32 %v562, %v101
    %s564 = sld [smem:[#allocation2]]
    %v565 = vstv %s564
    %v566 = vmul.f32 %v565, %v557
    %s567 = sld [smem:[#allocation2 + $0x1]]
    %v568 = vstv %s567
    %v569 = vmul.f32 %v568, %v63
    %v570 = vadd.f32 %v566, %v569
    %s571 = sld [smem:[#allocation2 + $0x2]]
    %v572 = vstv %s571
    %v573 = vmul.f32 %v572, %v563
    %v574 = vadd.f32 %v570, %v573
    %s575 = sld [smem:[#allocation2 + $0x3]]
    %v576 = vstv %s575
    %v577 = vmul.f32 %v576, %v557
    %s578 = sld [smem:[#allocation2 + $0x4]]
    %v579 = vstv %s578
    %v580 = vmul.f32 %v579, %v63
    %v581 = vadd.f32 %v577, %v580
    %s582 = sld [smem:[#allocation2 + $0x5]]
    %v583 = vstv %s582
    %v584 = vmul.f32 %v583, %v563
    %v585 = vadd.f32 %v581, %v584
    %s586 = sld [smem:[#allocation2 + $0x6]]
    %v587 = vstv %s586
    %v588 = vmul.f32 %v587, %v557
    %s589 = sld [smem:[#allocation2 + $0x7]]
    %v590 = vstv %s589
    %v591 = vmul.f32 %v590, %v63
    %v592 = vadd.f32 %v588, %v591
    %s593 = sld [smem:[#allocation2 + $0x8]]
    %v594 = vstv %s593
    %v595 = vmul.f32 %v594, %v563
    %v596 = vadd.f32 %v592, %v595
    %v598 = vrot.slane %v574, 7
    %vm600 = vcmask 1040384
    %v601 = vsel %vm600, 0.0, %v598
    %v602 = vadd.f32 %v601, %v585
    %v604 = vrot.slane %v596, 1
    %vm606 = vcmask 1046528
    %v607 = vsel %vm606, %v604, 0.0
    %v608 = vadd.f32 %v602, %v607
    %610 = vrot.lane.b32.xlu0 %v550, 1
    %v611 = vpop.permute.xlu0 %610
    %v613 = vsel %vm555, 0.0, %v611
    %v614 = vmul.f32 %v613, %v85
    %615 = vrot.lane.b32.xlu0 %v550, 127
    %v616 = vpop.permute.xlu0 %615
    %v618 = vsel %vm561, %v616, 0.0
    %v619 = vmul.f32 %v618, %v101
    %s620 = sld [smem:[#allocation2 + $0x9]]
    %v621 = vstv %s620
    %v622 = vmul.f32 %v621, %v614
    %s623 = sld [smem:[#allocation2 + $0xa]]
    %v624 = vstv %s623
    %v625 = vmul.f32 %v624, %v550
    %v626 = vadd.f32 %v622, %v625
    %s627 = sld [smem:[#allocation2 + $0xb]]
    %v628 = vstv %s627
    %v629 = vmul.f32 %v628, %v619
    %v630 = vadd.f32 %v626, %v629
    %s631 = sld [smem:[#allocation2 + $0xc]]
    %v632 = vstv %s631
    %v633 = vmul.f32 %v632, %v614
    %s634 = sld [smem:[#allocation2 + $0xd]]
    %v635 = vstv %s634
    %v636 = vmul.f32 %v635, %v550
    %v637 = vadd.f32 %v633, %v636
    %s638 = sld [smem:[#allocation2 + $0xe]]
    %v639 = vstv %s638
    %v640 = vmul.f32 %v639, %v619
    %v641 = vadd.f32 %v637, %v640
    %s642 = sld [smem:[#allocation2 + $0xf]]
    %v643 = vstv %s642
    %v644 = vmul.f32 %v643, %v614
    %s645 = sld [smem:[#allocation2 + $0x10]]
    %v646 = vstv %s645
    %v647 = vmul.f32 %v646, %v550
    %v648 = vadd.f32 %v644, %v647
    %s649 = sld [smem:[#allocation2 + $0x11]]
    %v650 = vstv %s649
    %v651 = vmul.f32 %v650, %v619
    %v652 = vadd.f32 %v648, %v651
    %v654 = vrot.slane %v630, 7
    %v656 = vsel %vm600, 0.0, %v654
    %v657 = vadd.f32 %v656, %v641
    %v659 = vrot.slane %v652, 1
    %v661 = vsel %vm606, %v659, 0.0
    %v662 = vadd.f32 %v657, %v661
    %v663 = vadd.f32 %v608, %v662
    %s664 = sld [smem:[#allocation4]]
    %v665 = vstv %s664
    %v666 = vadd.f32 %v663, %v665
    %v667 = vtanh.pop %v666
    %v668 = vrot.slane %v667, 4
    %v669 = vadd.f32 %v667, %v668
    %v670 = vrot.slane %v669, 2
    %v671 = vadd.f32 %v669, %v670
    %v672 = vrot.slane %v671, 1
    %v673 = vadd.f32 %v671, %v672
    %v674 = vmul.f32 %v673, %v160
    %v675 = vmul.f32 %v667, %v64
    %677 = vrot.lane.b32.xlu0 %v675, 96
    %v678 = vpop.permute.xlu0 %677
    %680 = vrot.lane.b32.xlu0 %v675, 64
    %v681 = vpop.permute.xlu0 %680
    %682 = vrot.lane.b32.xlu0 %v678, 64
    %v683 = vpop.permute.xlu0 %682
    %v684 = vsel %vm80, %v675, 0
    %v686 = vsel %vm80, %v678, 0
    %v688 = vsel %vm80, %v681, 0
    %v690 = vsel %vm80, %v683, 0
    %692 = vmatprep.subr.mxu0 0.0
    %693 = vmatpush1.xpose.msra.mxu0 0.0
    %694 = vmatprep.subr.mxu0 0.0
    %695 = vmatpush1.xpose.msra.mxu0 0.0
    %696 = vmatprep.subr.mxu0 0.0
    %697 = vmatpush1.xpose.msra.mxu0 0.0
    %698 = vmatprep.subr.mxu0 0.0
    %699 = vmatpush1.xpose.msra.mxu0 0.0
    %700 = vmatprep.subr.mxu0 0.0
    %701 = vmatpush1.xpose.msra.mxu0 0.0
    %702 = vmatprep.subr.mxu0 0.0
    %703 = vmatpush1.xpose.msra.mxu0 0.0
    %704 = vmatprep.subr.mxu0 0.0
    %705 = vmatpush1.xpose.msra.mxu0 0.0
    %706 = vmatprep.subr.mxu0 0.0
    %707 = vmatpush1.xpose.msra.mxu0 0.0
    %708 = vmatprep.subr.mxu0 0.0
    %709 = vmatpush1.xpose.msra.mxu0 0.0
    %710 = vmatprep.subr.mxu0 0.0
    %711 = vmatpush1.xpose.msra.mxu0 0.0
    %712 = vmatprep.subr.mxu0 0.0
    %713 = vmatpush1.xpose.msra.mxu0 0.0
    %714 = vmatprep.subr.mxu0 0.0
    %715 = vmatpush1.xpose.msra.mxu0 0.0
    %716 = vmatprep.subr.mxu0 0.0
    %717 = vmatpush1.xpose.msra.mxu0 0.0
    %718 = vmatprep.subr.mxu0 0.0
    %719 = vmatpush1.xpose.msra.mxu0 0.0
    %720 = vmatprep.subr.mxu0 0.0
    %721 = vmatpush1.xpose.msra.mxu0 %v690
    %722 = vmatprep.subr.mxu0 0.0
    %723 = vmatpush1.xpose.msra.mxu0 %v688
    %724 = vmatprep.subr.mxu0 0.0
    %725 = vmatpush2.xpose.msra.mxu0 0.0
    %726 = vmatprep.subr.mxu0 0.0
    %727 = vmatpush2.xpose.msra.mxu0 0.0
    %728 = vmatprep.subr.mxu0 0.0
    %729 = vmatpush2.xpose.msra.mxu0 0.0
    %730 = vmatprep.subr.mxu0 0.0
    %731 = vmatpush2.xpose.msra.mxu0 0.0
    %732 = vmatprep.subr.mxu0 0.0
    %733 = vmatpush2.xpose.msra.mxu0 0.0
    %734 = vmatprep.subr.mxu0 0.0
    %735 = vmatpush2.xpose.msra.mxu0 0.0
    %736 = vmatprep.subr.mxu0 0.0
    %737 = vmatpush2.xpose.msra.mxu0 0.0
    %738 = vmatprep.subr.mxu0 0.0
    %739 = vmatpush2.xpose.msra.mxu0 0.0
    %740 = vmatprep.subr.mxu0 0.0
    %741 = vmatpush2.xpose.msra.mxu0 0.0
    %742 = vmatprep.subr.mxu0 0.0
    %743 = vmatpush2.xpose.msra.mxu0 0.0
    %744 = vmatprep.subr.mxu0 0.0
    %745 = vmatpush2.xpose.msra.mxu0 0.0
    %746 = vmatprep.subr.mxu0 0.0
    %747 = vmatpush2.xpose.msra.mxu0 0.0
    %748 = vmatprep.subr.mxu0 0.0
    %749 = vmatpush2.xpose.msra.mxu0 0.0
    %750 = vmatprep.subr.mxu0 0.0
    %751 = vmatpush2.xpose.msra.mxu0 0.0
    %752 = vmatprep.subr.mxu0 0.0
    %753 = vmatpush2.xpose.msra.mxu0 0.0
    %754 = vmatprep.subr.mxu0 0.0
    %755 = vmatpush2.xpose.msra.mxu0 0.0
    %756 = vmatprep.mubr.f32.mxu0 0.0
    %757 = vmatmul.mubr.f32.gmra.mxu0 %v684
    %v758 = vpop.f32.mrf.mxu0
    %v759 = vadd.f32 0.0, %v758
    %v760 = vpop.f32.mrf.mxu0
    %761 = vmatprep.mubr.f32.mxu0 0.0
    %762 = vmatmul.mubr.f32.gmra.mxu0 %v686
    %v763 = vpop.f32.mrf.mxu0
    %v764 = vadd.f32 0.0, %v763
    %v765 = vpop.f32.mrf.mxu0
    %766 = vdwg.mxu0
    %v767 = vmul.f32 %v675, %v675
    %v768 = vmul.f32 %v678, %v678
    %v769 = vsel %vm80, %v767, 0.0
    %770 = vadd.xlane.f32.xlu0 %v769
    %v771 = vpop.xlane.xlu0 %770
    %v772 = vsel %vm80, %v768, 0.0
    %773 = vadd.xlane.f32.xlu0 %v772
    %v774 = vpop.xlane.xlu0 %773
    %777 = vrot.lane.b32.xlu0 %v767, 64
    %v778 = vpop.permute.xlu0 %777
    %779 = vrot.lane.b32.xlu0 %v768, 64
    %v780 = vpop.permute.xlu0 %779
    %v783 = vsel %vm80, %v778, 0.0
    %784 = vadd.xlane.f32.xlu0 %v783
    %v785 = vpop.xlane.xlu0 %784
    %v786 = vsel %vm80, %v780, 0.0
    %787 = vadd.xlane.f32.xlu0 %v786
    %v788 = vpop.xlane.xlu0 %787
    %789 = vxpose.xlu0.b32.start [1/16] %v785, 128
    %790 = vxpose.xlu0.b32.cont [2/16] %v788, 128
    %791 = vxpose.xlu0.b32.cont [3/16] 0.0, 128
    %792 = vxpose.xlu0.b32.cont [4/16] 0.0, 128
    %793 = vxpose.xlu0.b32.cont [5/16] 0.0, 128
    %794 = vxpose.xlu0.b32.cont [6/16] 0.0, 128
    %795 = vxpose.xlu0.b32.cont [7/16] 0.0, 128
    %796 = vxpose.xlu0.b32.cont [8/16] 0.0, 128
    %797 = vxpose.xlu0.b32.cont [9/16] 0.0, 128
    %798 = vxpose.xlu0.b32.cont [10/16] 0.0, 128
    %799 = vxpose.xlu0.b32.cont [11/16] 0.0, 128
    %800 = vxpose.xlu0.b32.cont [12/16] 0.0, 128
    %801 = vxpose.xlu0.b32.cont [13/16] 0.0, 128
    %802 = vxpose.xlu0.b32.cont [14/16] 0.0, 128
    %803 = vxpose.xlu0.b32.cont [15/16] 0.0, 128
    %804 = vxpose.xlu0.b32.end [16/16] 0.0, 128
    %v805 = vpop.trf.xlu0
    %v806 = vpop.trf.xlu0
    %v807 = vpop.trf.xlu0
    %v808 = vpop.trf.xlu0
    %v809 = vpop.trf.xlu0
    %v810 = vpop.trf.xlu0
    %v811 = vpop.trf.xlu0
    %v812 = vpop.trf.xlu0
    %v813 = vpop.trf.xlu0
    %v814 = vpop.trf.xlu0
    %v815 = vpop.trf.xlu0
    %v816 = vpop.trf.xlu0
    %v817 = vpop.trf.xlu0
    %v818 = vpop.trf.xlu0
    %v819 = vpop.trf.xlu0
    %v820 = vpop.trf.xlu0
    %v821 = vlaneseq
    %v822 = vshrl.u32 %v821, 7
    %v823 = vsub.s32 0, %v822
    %v824 = vrot.slane %v805, %v823
    %v825 = vadd.f32 %v771, %v824
    %v826 = vadd.f32 %v774, %v824
    %v827 = vmul.f32 %v759, 2.0
    %v828 = vmul.f32 %v764, 2.0
    %v829 = vsub.f32 %v825, %v827
    %v830 = vsub.f32 %v826, %v828
    %v831 = vmax.f32 %v829, 0.0
    %v832 = vmax.f32 %v830, 0.0
    %v833 = vrsqrt.pop %v831
    %v834 = vmul.f32 %v831, %v833
    %vm835 = vcmp.eq.f32.partialorder %v831, inf
    %v836 = vsel %vm835, %v831, %v834
    %vm837 = vcmp.eq.f32.partialorder %v831, 0.0
    %v838 = vand.u32 %v831, 2147483648
    %v839 = vsel %vm837, %v838, %v836
    %v840 = vrsqrt.pop %v832
    %v841 = vmul.f32 %v832, %v840
    %vm842 = vcmp.eq.f32.partialorder %v832, inf
    %v843 = vsel %vm842, %v832, %v841
    %vm844 = vcmp.eq.f32.partialorder %v832, 0.0
    %v845 = vand.u32 %v832, 2147483648
    %v846 = vsel %vm844, %v845, %v843
    %v847 = vadd.f32 %v839, 1.0
    %v848 = vadd.f32 %v846, 1.0
    %v849 = vrcp.pop %v847
    %v850 = vmul.f32 %v152, %v849
    %v851 = vrcp.pop %v848
    %v852 = vmul.f32 %v153, %v851
    %v853 = vsel %vm341, %v850, 0.0
    %854 = vadd.xlane.f32.xlu0 %v853
    %v855 = vpop.xlane.xlu0 %854
    %v856 = vsel %vm341, %v852, 0.0
    %857 = vadd.xlane.f32.xlu0 %v856
    %v858 = vpop.xlane.xlu0 %857
    %v859 = vadd.f32 %v853, %v856
    %v860 = vrot.slane %v859, 4
    %v861 = vadd.f32 %v859, %v860
    %v862 = vrot.slane %v861, 2
    %v863 = vadd.f32 %v861, %v862
    %v864 = vrot.slane %v863, 1
    %v865 = vadd.f32 %v863, %v864
    %866 = vxpose.xlu0.b32.start [1/16] %v865, 128
    %867 = vxpose.xlu0.b32.cont [2/16] 0.0, 128
    %868 = vxpose.xlu0.b32.cont [3/16] 0.0, 128
    %869 = vxpose.xlu0.b32.cont [4/16] 0.0, 128
    %870 = vxpose.xlu0.b32.cont [5/16] 0.0, 128
    %871 = vxpose.xlu0.b32.cont [6/16] 0.0, 128
    %872 = vxpose.xlu0.b32.cont [7/16] 0.0, 128
    %873 = vxpose.xlu0.b32.cont [8/16] 0.0, 128
    %874 = vxpose.xlu0.b32.cont [9/16] 0.0, 128
    %875 = vxpose.xlu0.b32.cont [10/16] 0.0, 128
    %876 = vxpose.xlu0.b32.cont [11/16] 0.0, 128
    %877 = vxpose.xlu0.b32.cont [12/16] 0.0, 128
    %878 = vxpose.xlu0.b32.cont [13/16] 0.0, 128
    %879 = vxpose.xlu0.b32.cont [14/16] 0.0, 128
    %880 = vxpose.xlu0.b32.cont [15/16] 0.0, 128
    %881 = vxpose.xlu0.b32.end [16/16] 0.0, 128
    %v882 = vpop.trf.xlu0
    %v883 = vpop.trf.xlu0
    %v884 = vpop.trf.xlu0
    %v885 = vpop.trf.xlu0
    %v886 = vpop.trf.xlu0
    %v887 = vpop.trf.xlu0
    %v888 = vpop.trf.xlu0
    %v889 = vpop.trf.xlu0
    %v890 = vpop.trf.xlu0
    %v891 = vpop.trf.xlu0
    %v892 = vpop.trf.xlu0
    %v893 = vpop.trf.xlu0
    %v894 = vpop.trf.xlu0
    %v895 = vpop.trf.xlu0
    %v896 = vpop.trf.xlu0
    %v897 = vpop.trf.xlu0
    %v898 = vmul.f32 %v667, %v855
    %v899 = vmul.f32 %v667, %v858
    %901 = vset.pattern.permute.xlu0 0
    %902 = vperm.xlu0 %901, %v882
    %v903 = vpop.permute.xlu0 %902
    %v905 = vmul.f32 %v667, %v903
    %907 = vset.pattern.permute.xlu0 0
    %908 = vperm.xlu0 %907, %v883
    %v909 = vpop.permute.xlu0 %908
    %v911 = vmul.f32 %v667, %v909
    %v912 = vsel %vm80, %v898, %v899
    %v913 = vsel %vm82, %v912, %v905
    %v914 = vsel %vm84, %v913, %v911
    %v916 = vrot.slane %v914, 7
    %v918 = vsel %vm600, 0.0, %v916
    %v919 = vadd.f32 %v918, %v914
    %v920 = vrot.slane %v914, 1
    %v922 = vsel %vm606, %v920, 0.0
    %v923 = vadd.f32 %v919, %v922
    %v924 = vmul.f32 %v923, 0.33333334
    %v925 = vadd.f32 %v924, %v63
    %s926 = scalar_lea.vmem %s2, 8
    %v927 = vld [vmem:[%s926] sm:$0xff]
    %v928 = vmul.f32 %v925, %v64
    %930 = vrot.lane.b32.xlu0 %v928, 96
    %v931 = vpop.permute.xlu0 %930
    %933 = vrot.lane.b32.xlu0 %v928, 64
    %v934 = vpop.permute.xlu0 %933
    %935 = vrot.lane.b32.xlu0 %v931, 64
    %v936 = vpop.permute.xlu0 %935
    %v937 = vsel %vm80, %v928, 0
    %v939 = vsel %vm80, %v931, 0
    %v941 = vsel %vm80, %v934, 0
    %v943 = vsel %vm80, %v936, 0
    %945 = vmatprep.subr.mxu0 0.0
    %946 = vmatpush1.xpose.msra.mxu0 0.0
    %947 = vmatprep.subr.mxu0 0.0
    %948 = vmatpush1.xpose.msra.mxu0 0.0
    %949 = vmatprep.subr.mxu0 0.0
    %950 = vmatpush1.xpose.msra.mxu0 0.0
    %951 = vmatprep.subr.mxu0 0.0
    %952 = vmatpush1.xpose.msra.mxu0 0.0
    %953 = vmatprep.subr.mxu0 0.0
    %954 = vmatpush1.xpose.msra.mxu0 0.0
    %955 = vmatprep.subr.mxu0 0.0
    %956 = vmatpush1.xpose.msra.mxu0 0.0
    %957 = vmatprep.subr.mxu0 0.0
    %958 = vmatpush1.xpose.msra.mxu0 0.0
    %959 = vmatprep.subr.mxu0 0.0
    %960 = vmatpush1.xpose.msra.mxu0 0.0
    %961 = vmatprep.subr.mxu0 0.0
    %962 = vmatpush1.xpose.msra.mxu0 0.0
    %963 = vmatprep.subr.mxu0 0.0
    %964 = vmatpush1.xpose.msra.mxu0 0.0
    %965 = vmatprep.subr.mxu0 0.0
    %966 = vmatpush1.xpose.msra.mxu0 0.0
    %967 = vmatprep.subr.mxu0 0.0
    %968 = vmatpush1.xpose.msra.mxu0 0.0
    %969 = vmatprep.subr.mxu0 0.0
    %970 = vmatpush1.xpose.msra.mxu0 0.0
    %971 = vmatprep.subr.mxu0 0.0
    %972 = vmatpush1.xpose.msra.mxu0 0.0
    %973 = vmatprep.subr.mxu0 0.0
    %974 = vmatpush1.xpose.msra.mxu0 %v943
    %975 = vmatprep.subr.mxu0 0.0
    %976 = vmatpush1.xpose.msra.mxu0 %v941
    %977 = vmatprep.subr.mxu0 0.0
    %978 = vmatpush2.xpose.msra.mxu0 0.0
    %979 = vmatprep.subr.mxu0 0.0
    %980 = vmatpush2.xpose.msra.mxu0 0.0
    %981 = vmatprep.subr.mxu0 0.0
    %982 = vmatpush2.xpose.msra.mxu0 0.0
    %983 = vmatprep.subr.mxu0 0.0
    %984 = vmatpush2.xpose.msra.mxu0 0.0
    %985 = vmatprep.subr.mxu0 0.0
    %986 = vmatpush2.xpose.msra.mxu0 0.0
    %987 = vmatprep.subr.mxu0 0.0
    %988 = vmatpush2.xpose.msra.mxu0 0.0
    %989 = vmatprep.subr.mxu0 0.0
    %990 = vmatpush2.xpose.msra.mxu0 0.0
    %991 = vmatprep.subr.mxu0 0.0
    %992 = vmatpush2.xpose.msra.mxu0 0.0
    %993 = vmatprep.subr.mxu0 0.0
    %994 = vmatpush2.xpose.msra.mxu0 0.0
    %995 = vmatprep.subr.mxu0 0.0
    %996 = vmatpush2.xpose.msra.mxu0 0.0
    %997 = vmatprep.subr.mxu0 0.0
    %998 = vmatpush2.xpose.msra.mxu0 0.0
    %999 = vmatprep.subr.mxu0 0.0
    %1000 = vmatpush2.xpose.msra.mxu0 0.0
    %1001 = vmatprep.subr.mxu0 0.0
    %1002 = vmatpush2.xpose.msra.mxu0 0.0
    %1003 = vmatprep.subr.mxu0 0.0
    %1004 = vmatpush2.xpose.msra.mxu0 0.0
    %1005 = vmatprep.subr.mxu0 0.0
    %1006 = vmatpush2.xpose.msra.mxu0 0.0
    %1007 = vmatprep.subr.mxu0 0.0
    %1008 = vmatpush2.xpose.msra.mxu0 0.0
    %1009 = vmatprep.mubr.f32.mxu0 0.0
    %1010 = vmatmul.mubr.f32.gmra.mxu0 %v937
    %v1011 = vpop.f32.mrf.mxu0
    %v1012 = vadd.f32 0.0, %v1011
    %v1013 = vpop.f32.mrf.mxu0
    %1014 = vmatprep.mubr.f32.mxu0 0.0
    %1015 = vmatmul.mubr.f32.gmra.mxu0 %v939
    %v1016 = vpop.f32.mrf.mxu0
    %v1017 = vadd.f32 0.0, %v1016
    %v1018 = vpop.f32.mrf.mxu0
    %1019 = vdwg.mxu0
    %v1020 = vmul.f32 %v928, %v928
    %v1021 = vmul.f32 %v931, %v931
    %v1022 = vsel %vm80, %v1020, 0.0
    %1023 = vadd.xlane.f32.xlu0 %v1022
    %v1024 = vpop.xlane.xlu0 %1023
    %v1025 = vsel %vm80, %v1021, 0.0
    %1026 = vadd.xlane.f32.xlu0 %v1025
    %v1027 = vpop.xlane.xlu0 %1026
    %1030 = vrot.lane.b32.xlu0 %v1020, 64
    %v1031 = vpop.permute.xlu0 %1030
    %1032 = vrot.lane.b32.xlu0 %v1021, 64
    %v1033 = vpop.permute.xlu0 %1032
    %v1036 = vsel %vm80, %v1031, 0.0
    %1037 = vadd.xlane.f32.xlu0 %v1036
    %v1038 = vpop.xlane.xlu0 %1037
    %v1039 = vsel %vm80, %v1033, 0.0
    %1040 = vadd.xlane.f32.xlu0 %v1039
    %v1041 = vpop.xlane.xlu0 %1040
    %1042 = vxpose.xlu0.b32.start [1/16] %v1038, 128
    %1043 = vxpose.xlu0.b32.cont [2/16] %v1041, 128
    %1044 = vxpose.xlu0.b32.cont [3/16] 0.0, 128
    %1045 = vxpose.xlu0.b32.cont [4/16] 0.0, 128
    %1046 = vxpose.xlu0.b32.cont [5/16] 0.0, 128
    %1047 = vxpose.xlu0.b32.cont [6/16] 0.0, 128
    %1048 = vxpose.xlu0.b32.cont [7/16] 0.0, 128
    %1049 = vxpose.xlu0.b32.cont [8/16] 0.0, 128
    %1050 = vxpose.xlu0.b32.cont [9/16] 0.0, 128
    %1051 = vxpose.xlu0.b32.cont [10/16] 0.0, 128
    %1052 = vxpose.xlu0.b32.cont [11/16] 0.0, 128
    %1053 = vxpose.xlu0.b32.cont [12/16] 0.0, 128
    %1054 = vxpose.xlu0.b32.cont [13/16] 0.0, 128
    %1055 = vxpose.xlu0.b32.cont [14/16] 0.0, 128
    %1056 = vxpose.xlu0.b32.cont [15/16] 0.0, 128
    %1057 = vxpose.xlu0.b32.end [16/16] 0.0, 128
    %v1058 = vpop.trf.xlu0
    %v1059 = vpop.trf.xlu0
    %v1060 = vpop.trf.xlu0
    %v1061 = vpop.trf.xlu0
    %v1062 = vpop.trf.xlu0
    %v1063 = vpop.trf.xlu0
    %v1064 = vpop.trf.xlu0
    %v1065 = vpop.trf.xlu0
    %v1066 = vpop.trf.xlu0
    %v1067 = vpop.trf.xlu0
    %v1068 = vpop.trf.xlu0
    %v1069 = vpop.trf.xlu0
    %v1070 = vpop.trf.xlu0
    %v1071 = vpop.trf.xlu0
    %v1072 = vpop.trf.xlu0
    %v1073 = vpop.trf.xlu0
    %v1074 = vlaneseq
    %v1075 = vshrl.u32 %v1074, 7
    %v1076 = vsub.s32 0, %v1075
    %v1077 = vrot.slane %v1058, %v1076
    %v1078 = vadd.f32 %v1024, %v1077
    %v1079 = vadd.f32 %v1027, %v1077
    %v1080 = vmul.f32 %v1012, 2.0
    %v1081 = vmul.f32 %v1017, 2.0
    %v1082 = vsub.f32 %v1078, %v1080
    %v1083 = vsub.f32 %v1079, %v1081
    %v1084 = vmax.f32 %v1082, 0.0
    %v1085 = vmax.f32 %v1083, 0.0
    %v1086 = vrsqrt.pop %v1084
    %v1087 = vmul.f32 %v1084, %v1086
    %vm1088 = vcmp.eq.f32.partialorder %v1084, inf
    %v1089 = vsel %vm1088, %v1084, %v1087
    %vm1090 = vcmp.eq.f32.partialorder %v1084, 0.0
    %v1091 = vand.u32 %v1084, 2147483648
    %v1092 = vsel %vm1090, %v1091, %v1089
    %v1093 = vrsqrt.pop %v1085
    %v1094 = vmul.f32 %v1085, %v1093
    %vm1095 = vcmp.eq.f32.partialorder %v1085, inf
    %v1096 = vsel %vm1095, %v1085, %v1094
    %vm1097 = vcmp.eq.f32.partialorder %v1085, 0.0
    %v1098 = vand.u32 %v1085, 2147483648
    %v1099 = vsel %vm1097, %v1098, %v1096
    %v1100 = vadd.f32 %v1092, 1.0
    %v1101 = vadd.f32 %v1099, 1.0
    %v1102 = vrcp.pop %v1100
    %v1103 = vmul.f32 %v152, %v1102
    %v1104 = vrcp.pop %v1101
    %v1105 = vmul.f32 %v153, %v1104
    %v1107 = vsel %vm341, %v1103, 0
    %v1110 = vsel %vm341, %v1105, 0
    %1112 = vmatprep.subr.mxu0 0.0
    %1113 = vmatpush1.msra.mxu0 0.0
    %1114 = vmatprep.subr.mxu0 0.0
    %1115 = vmatpush1.msra.mxu0 0.0
    %1116 = vmatprep.subr.mxu0 0.0
    %1117 = vmatpush1.msra.mxu0 0.0
    %1118 = vmatprep.subr.mxu0 0.0
    %1119 = vmatpush1.msra.mxu0 0.0
    %1120 = vmatprep.subr.mxu0 0.0
    %1121 = vmatpush1.msra.mxu0 0.0
    %1122 = vmatprep.subr.mxu0 0.0
    %1123 = vmatpush1.msra.mxu0 0.0
    %1124 = vmatprep.subr.mxu0 0.0
    %1125 = vmatpush1.msra.mxu0 0.0
    %1126 = vmatprep.subr.mxu0 0.0
    %1127 = vmatpush1.msra.mxu0 0.0
    %1128 = vmatprep.subr.mxu0 0.0
    %1129 = vmatpush1.msra.mxu0 0.0
    %1130 = vmatprep.subr.mxu0 0.0
    %1131 = vmatpush1.msra.mxu0 0.0
    %1132 = vmatprep.subr.mxu0 0.0
    %1133 = vmatpush1.msra.mxu0 0.0
    %1134 = vmatprep.subr.mxu0 0.0
    %1135 = vmatpush1.msra.mxu0 0.0
    %1136 = vmatprep.subr.mxu0 0.0
    %1137 = vmatpush1.msra.mxu0 0.0
    %1138 = vmatprep.subr.mxu0 0.0
    %1139 = vmatpush1.msra.mxu0 0.0
    %1140 = vmatprep.subr.mxu0 0.0
    %1141 = vmatpush1.msra.mxu0 %v927
    %1142 = vmatprep.subr.mxu0 0.0
    %1143 = vmatpush1.msra.mxu0 %v927
    %1144 = vmatprep.subr.mxu0 0.0
    %1145 = vmatpush2.msra.mxu0 0.0
    %1146 = vmatprep.subr.mxu0 0.0
    %1147 = vmatpush2.msra.mxu0 0.0
    %1148 = vmatprep.subr.mxu0 0.0
    %1149 = vmatpush2.msra.mxu0 0.0
    %1150 = vmatprep.subr.mxu0 0.0
    %1151 = vmatpush2.msra.mxu0 0.0
    %1152 = vmatprep.subr.mxu0 0.0
    %1153 = vmatpush2.msra.mxu0 0.0
    %1154 = vmatprep.subr.mxu0 0.0
    %1155 = vmatpush2.msra.mxu0 0.0
    %1156 = vmatprep.subr.mxu0 0.0
    %1157 = vmatpush2.msra.mxu0 0.0
    %1158 = vmatprep.subr.mxu0 0.0
    %1159 = vmatpush2.msra.mxu0 0.0
    %1160 = vmatprep.subr.mxu0 0.0
    %1161 = vmatpush2.msra.mxu0 0.0
    %1162 = vmatprep.subr.mxu0 0.0
    %1163 = vmatpush2.msra.mxu0 0.0
    %1164 = vmatprep.subr.mxu0 0.0
    %1165 = vmatpush2.msra.mxu0 0.0
    %1166 = vmatprep.subr.mxu0 0.0
    %1167 = vmatpush2.msra.mxu0 0.0
    %1168 = vmatprep.subr.mxu0 0.0
    %1169 = vmatpush2.msra.mxu0 0.0
    %1170 = vmatprep.subr.mxu0 0.0
    %1171 = vmatpush2.msra.mxu0 0.0
    %1172 = vmatprep.subr.mxu0 0.0
    %1173 = vmatpush2.msra.mxu0 0.0
    %1174 = vmatprep.subr.mxu0 0.0
    %1175 = vmatpush2.msra.mxu0 0.0
    %1176 = vmatprep.mubr.f32.mxu0 0.0
    %1177 = vmatmul.mubr.f32.gmra.mxu0 %v1107
    %v1178 = vpop.f32.mrf.mxu0
    %v1179 = vadd.f32 0.0, %v1178
    %v1180 = vpop.f32.mrf.mxu0
    %1181 = vmatprep.mubr.f32.mxu0 0.0
    %1182 = vmatmul.mubr.f32.gmra.mxu0 %v1110
    %v1183 = vpop.f32.mrf.mxu0
    %v1184 = vadd.f32 0.0, %v1183
    %v1185 = vpop.f32.mrf.mxu0
    %1186 = vdwg.mxu0
    %1187 = vxpose.xlu0.b32.start [1/16] %v1103, 128
    %1188 = vxpose.xlu0.b32.cont [2/16] %v1105, 128
    %1189 = vxpose.xlu0.b32.cont [3/16] 0.0, 128
    %1190 = vxpose.xlu0.b32.cont [4/16] 0.0, 128
    %1191 = vxpose.xlu0.b32.cont [5/16] 0.0, 128
    %1192 = vxpose.xlu0.b32.cont [6/16] 0.0, 128
    %1193 = vxpose.xlu0.b32.cont [7/16] 0.0, 128
    %1194 = vxpose.xlu0.b32.cont [8/16] 0.0, 128
    %1195 = vxpose.xlu0.b32.cont [9/16] 0.0, 128
    %1196 = vxpose.xlu0.b32.cont [10/16] 0.0, 128
    %1197 = vxpose.xlu0.b32.cont [11/16] 0.0, 128
    %1198 = vxpose.xlu0.b32.cont [12/16] 0.0, 128
    %1199 = vxpose.xlu0.b32.cont [13/16] 0.0, 128
    %1200 = vxpose.xlu0.b32.cont [14/16] 0.0, 128
    %1201 = vxpose.xlu0.b32.cont [15/16] 0.0, 128
    %1202 = vxpose.xlu0.b32.end [16/16] 0.0, 128
    %v1203 = vpop.trf.xlu0
    %v1204 = vpop.trf.xlu0
    %v1205 = vpop.trf.xlu0
    %v1206 = vpop.trf.xlu0
    %v1207 = vpop.trf.xlu0
    %v1208 = vpop.trf.xlu0
    %v1209 = vpop.trf.xlu0
    %v1210 = vpop.trf.xlu0
    %v1211 = vpop.trf.xlu0
    %v1212 = vpop.trf.xlu0
    %v1213 = vpop.trf.xlu0
    %v1214 = vpop.trf.xlu0
    %v1215 = vpop.trf.xlu0
    %v1216 = vpop.trf.xlu0
    %v1217 = vpop.trf.xlu0
    %v1218 = vpop.trf.xlu0
    %v1220 = vsel %vm341, %v1203, 0
    %v1223 = vsel %vm341, %v1204, 0
    %1225 = vmatprep.subr.mxu0 0.0
    %1226 = vmatpush1.msra.mxu0 0.0
    %1227 = vmatprep.subr.mxu0 0.0
    %1228 = vmatpush1.msra.mxu0 0.0
    %1229 = vmatprep.subr.mxu0 0.0
    %1230 = vmatpush1.msra.mxu0 0.0
    %1231 = vmatprep.subr.mxu0 0.0
    %1232 = vmatpush1.msra.mxu0 0.0
    %1233 = vmatprep.subr.mxu0 0.0
    %1234 = vmatpush1.msra.mxu0 0.0
    %1235 = vmatprep.subr.mxu0 0.0
    %1236 = vmatpush1.msra.mxu0 0.0
    %1237 = vmatprep.subr.mxu0 0.0
    %1238 = vmatpush1.msra.mxu0 0.0
    %1239 = vmatprep.subr.mxu0 0.0
    %1240 = vmatpush1.msra.mxu0 0.0
    %1241 = vmatprep.subr.mxu0 0.0
    %1242 = vmatpush1.msra.mxu0 0.0
    %1243 = vmatprep.subr.mxu0 0.0
    %1244 = vmatpush1.msra.mxu0 0.0
    %1245 = vmatprep.subr.mxu0 0.0
    %1246 = vmatpush1.msra.mxu0 0.0
    %1247 = vmatprep.subr.mxu0 0.0
    %1248 = vmatpush1.msra.mxu0 0.0
    %1249 = vmatprep.subr.mxu0 0.0
    %1250 = vmatpush1.msra.mxu0 0.0
    %1251 = vmatprep.subr.mxu0 0.0
    %1252 = vmatpush1.msra.mxu0 0.0
    %1253 = vmatprep.subr.mxu0 0.0
    %1254 = vmatpush1.msra.mxu0 %v927
    %1255 = vmatprep.subr.mxu0 0.0
    %1256 = vmatpush1.msra.mxu0 %v927
    %1257 = vmatprep.subr.mxu0 0.0
    %1258 = vmatpush2.msra.mxu0 0.0
    %1259 = vmatprep.subr.mxu0 0.0
    %1260 = vmatpush2.msra.mxu0 0.0
    %1261 = vmatprep.subr.mxu0 0.0
    %1262 = vmatpush2.msra.mxu0 0.0
    %1263 = vmatprep.subr.mxu0 0.0
    %1264 = vmatpush2.msra.mxu0 0.0
    %1265 = vmatprep.subr.mxu0 0.0
    %1266 = vmatpush2.msra.mxu0 0.0
    %1267 = vmatprep.subr.mxu0 0.0
    %1268 = vmatpush2.msra.mxu0 0.0
    %1269 = vmatprep.subr.mxu0 0.0
    %1270 = vmatpush2.msra.mxu0 0.0
    %1271 = vmatprep.subr.mxu0 0.0
    %1272 = vmatpush2.msra.mxu0 0.0
    %1273 = vmatprep.subr.mxu0 0.0
    %1274 = vmatpush2.msra.mxu0 0.0
    %1275 = vmatprep.subr.mxu0 0.0
    %1276 = vmatpush2.msra.mxu0 0.0
    %1277 = vmatprep.subr.mxu0 0.0
    %1278 = vmatpush2.msra.mxu0 0.0
    %1279 = vmatprep.subr.mxu0 0.0
    %1280 = vmatpush2.msra.mxu0 0.0
    %1281 = vmatprep.subr.mxu0 0.0
    %1282 = vmatpush2.msra.mxu0 0.0
    %1283 = vmatprep.subr.mxu0 0.0
    %1284 = vmatpush2.msra.mxu0 0.0
    %1285 = vmatprep.subr.mxu0 0.0
    %1286 = vmatpush2.msra.mxu0 0.0
    %1287 = vmatprep.subr.mxu0 0.0
    %1288 = vmatpush2.msra.mxu0 0.0
    %1289 = vmatprep.mubr.f32.mxu0 0.0
    %1290 = vmatmul.mubr.f32.gmra.mxu0 %v1220
    %v1291 = vpop.f32.mrf.mxu0
    %v1292 = vadd.f32 0.0, %v1291
    %v1293 = vpop.f32.mrf.mxu0
    %1294 = vmatprep.mubr.f32.mxu0 0.0
    %1295 = vmatmul.mubr.f32.gmra.mxu0 %v1223
    %v1296 = vpop.f32.mrf.mxu0
    %v1297 = vadd.f32 0.0, %v1296
    %v1298 = vpop.f32.mrf.mxu0
    %1299 = vdwg.mxu0
    %1301 = vrot.lane.b32.xlu0 %v1184, 32
    %v1302 = vpop.permute.xlu0 %1301
    %1305 = vrot.lane.b32.xlu0 %v1292, 64
    %v1306 = vpop.permute.xlu0 %1305
    %1309 = vrot.lane.b32.xlu0 %v1297, 96
    %v1310 = vpop.permute.xlu0 %1309
    %v1312 = vsel %vm80, %v1179, %v1302
    %v1313 = vsel %vm82, %v1312, %v1306
    %v1314 = vsel %vm84, %v1313, %v1310
    %1316 = vrot.lane.b32.xlu0 %v925, 1
    %v1317 = vpop.permute.xlu0 %1316
    %v1319 = vsel %vm555, 0.0, %v1317
    %v1320 = vmul.f32 %v1319, %v85
    %1321 = vrot.lane.b32.xlu0 %v925, 127
    %v1322 = vpop.permute.xlu0 %1321
    %v1324 = vsel %vm561, %v1322, 0.0
    %v1325 = vmul.f32 %v1324, %v101
    %s1326 = sld [smem:[#allocation2 + $0x12]]
    %v1327 = vstv %s1326
    %v1328 = vmul.f32 %v1327, %v1320
    %s1329 = sld [smem:[#allocation2 + $0x13]]
    %v1330 = vstv %s1329
    %v1331 = vmul.f32 %v1330, %v925
    %v1332 = vadd.f32 %v1328, %v1331
    %s1333 = sld [smem:[#allocation2 + $0x14]]
    %v1334 = vstv %s1333
    %v1335 = vmul.f32 %v1334, %v1325
    %v1336 = vadd.f32 %v1332, %v1335
    %s1337 = sld [smem:[#allocation2 + $0x15]]
    %v1338 = vstv %s1337
    %v1339 = vmul.f32 %v1338, %v1320
    %s1340 = sld [smem:[#allocation2 + $0x16]]
    %v1341 = vstv %s1340
    %v1342 = vmul.f32 %v1341, %v925
    %v1343 = vadd.f32 %v1339, %v1342
    %s1344 = sld [smem:[#allocation2 + $0x17]]
    %v1345 = vstv %s1344
    %v1346 = vmul.f32 %v1345, %v1325
    %v1347 = vadd.f32 %v1343, %v1346
    %s1348 = sld [smem:[#allocation2 + $0x18]]
    %v1349 = vstv %s1348
    %v1350 = vmul.f32 %v1349, %v1320
    %s1351 = sld [smem:[#allocation2 + $0x19]]
    %v1352 = vstv %s1351
    %v1353 = vmul.f32 %v1352, %v925
    %v1354 = vadd.f32 %v1350, %v1353
    %s1355 = sld [smem:[#allocation2 + $0x1a]]
    %v1356 = vstv %s1355
    %v1357 = vmul.f32 %v1356, %v1325
    %v1358 = vadd.f32 %v1354, %v1357
    %v1360 = vrot.slane %v1336, 7
    %v1362 = vsel %vm600, 0.0, %v1360
    %v1363 = vadd.f32 %v1362, %v1347
    %v1365 = vrot.slane %v1358, 1
    %v1367 = vsel %vm606, %v1365, 0.0
    %v1368 = vadd.f32 %v1363, %v1367
    %1370 = vrot.lane.b32.xlu0 %v1314, 1
    %v1371 = vpop.permute.xlu0 %1370
    %v1373 = vsel %vm555, 0.0, %v1371
    %v1374 = vmul.f32 %v1373, %v85
    %1375 = vrot.lane.b32.xlu0 %v1314, 127
    %v1376 = vpop.permute.xlu0 %1375
    %v1378 = vsel %vm561, %v1376, 0.0
    %v1379 = vmul.f32 %v1378, %v101
    %s1380 = sld [smem:[#allocation2 + $0x1b]]
    %v1381 = vstv %s1380
    %v1382 = vmul.f32 %v1381, %v1374
    %s1383 = sld [smem:[#allocation2 + $0x1c]]
    %v1384 = vstv %s1383
    %v1385 = vmul.f32 %v1384, %v1314
    %v1386 = vadd.f32 %v1382, %v1385
    %s1387 = sld [smem:[#allocation2 + $0x1d]]
    %v1388 = vstv %s1387
    %v1389 = vmul.f32 %v1388, %v1379
    %v1390 = vadd.f32 %v1386, %v1389
    %s1391 = sld [smem:[#allocation2 + $0x1e]]
    %v1392 = vstv %s1391
    %v1393 = vmul.f32 %v1392, %v1374
    %s1394 = sld [smem:[#allocation2 + $0x1f]]
    %v1395 = vstv %s1394
    %v1396 = vmul.f32 %v1395, %v1314
    %v1397 = vadd.f32 %v1393, %v1396
    %s1398 = sld [smem:[#allocation2 + $0x20]]
    %v1399 = vstv %s1398
    %v1400 = vmul.f32 %v1399, %v1379
    %v1401 = vadd.f32 %v1397, %v1400
    %s1402 = sld [smem:[#allocation2 + $0x21]]
    %v1403 = vstv %s1402
    %v1404 = vmul.f32 %v1403, %v1374
    %s1405 = sld [smem:[#allocation2 + $0x22]]
    %v1406 = vstv %s1405
    %v1407 = vmul.f32 %v1406, %v1314
    %v1408 = vadd.f32 %v1404, %v1407
    %s1409 = sld [smem:[#allocation2 + $0x23]]
    %v1410 = vstv %s1409
    %v1411 = vmul.f32 %v1410, %v1379
    %v1412 = vadd.f32 %v1408, %v1411
    %v1414 = vrot.slane %v1390, 7
    %v1416 = vsel %vm600, 0.0, %v1414
    %v1417 = vadd.f32 %v1416, %v1401
    %v1419 = vrot.slane %v1412, 1
    %v1421 = vsel %vm606, %v1419, 0.0
    %v1422 = vadd.f32 %v1417, %v1421
    %v1423 = vadd.f32 %v1368, %v1422
    %s1424 = sld [smem:[#allocation4 + $0x1]]
    %v1425 = vstv %s1424
    %v1426 = vadd.f32 %v1423, %v1425
    %v1427 = vtanh.pop %v1426
    %v1428 = vrot.slane %v1427, 4
    %v1429 = vadd.f32 %v1427, %v1428
    %v1430 = vrot.slane %v1429, 2
    %v1431 = vadd.f32 %v1429, %v1430
    %v1432 = vrot.slane %v1431, 1
    %v1433 = vadd.f32 %v1431, %v1432
    %v1434 = vmul.f32 %v1433, %v160
    %1436 = vrot.lane.b32.xlu0 %v674, 32
    %v1437 = vpop.permute.xlu0 %1436
    %1440 = vrot.lane.b32.xlu0 %v1434, 64
    %v1441 = vpop.permute.xlu0 %1440
    %1444 = vrot.lane.b32.xlu0 %v161, 32
    %v1445 = vpop.permute.xlu0 %1444
    %1447 = vrot.lane.b32.xlu0 %v674, 64
    %v1448 = vpop.permute.xlu0 %1447
    %1450 = vrot.lane.b32.xlu0 %v1434, 96
    %v1451 = vpop.permute.xlu0 %1450
    %v1453 = vsel %vm80, %v161, %v1437
    %v1454 = vsel %vm82, %v1453, %v1441
    %v1455 = vsel %vm84, %v1454, %v1445
    %v1456 = vsel %vm80, %v1448, %v1451
    %1457 = vrot.lane.b32.xlu0 %v161, 96
    %v1458 = vpop.permute.xlu0 %1457
    %1460 = vrot.lane.b32.xlu0 %v1434, 32
    %v1461 = vpop.permute.xlu0 %1460
    %v1463 = vsel %vm80, %v1458, %v674
    %v1464 = vsel %vm82, %v1463, %v1461
    %v1465 = vsel %vm84, %v1464, %v161
    %v1466 = vsel %vm80, %v1437, %v1441
    %v1469 = vrot.slane %v1465, 7
    %v1470 = vrot.slane %v1466, 7
    %v1473 = vsel %vm600, %v1455, %v1469
    %v1474 = vsel %vm600, %v1456, %v1470
    %v1475 = vld [vmem:[%s5] sm:$0xff]
    %v1476 = vld [vmem:[%s5 + $0x8] sm:$0xff]
    %v1477 = vld [vmem:[%s5 + $0x10] sm:$0xff]
    %v1478 = vld [vmem:[%s5 + $0x18] sm:$0xff]
    %v1479 = vld [vmem:[%s5 + $0x20] sm:$0xff]
    %v1480 = vld [vmem:[%s5 + $0x28] sm:$0xff]
    %v1481 = vld [vmem:[%s5 + $0x30] sm:$0xff]
    %v1482 = vld [vmem:[%s5 + $0x38] sm:$0xff]
    %v1483 = vld [vmem:[%s5 + $0x40] sm:$0xff]
    %v1484 = vld [vmem:[%s5 + $0x48] sm:$0xff]
    %v1485 = vld [vmem:[%s5 + $0x50] sm:$0xff]
    %v1486 = vld [vmem:[%s5 + $0x58] sm:$0xff]
    %v1487 = vld [vmem:[%s5 + $0x60] sm:$0xff]
    %v1488 = vld [vmem:[%s5 + $0x68] sm:$0xff]
    %v1489 = vld [vmem:[%s5 + $0x70] sm:$0xff]
    %v1490 = vld [vmem:[%s5 + $0x78] sm:$0xff]
    %v1491 = vld [vmem:[%s5 + $0x80] sm:$0xff]
    %v1492 = vld [vmem:[%s5 + $0x88] sm:$0xff]
    %v1493 = vld [vmem:[%s5 + $0x90] sm:$0xff]
    %v1494 = vld [vmem:[%s5 + $0x98] sm:$0xff]
    %v1495 = vld [vmem:[%s5 + $0xa0] sm:$0xff]
    %v1496 = vld [vmem:[%s5 + $0xa8] sm:$0xff]
    %v1497 = vld [vmem:[%s5 + $0xb0] sm:$0xff]
    %v1498 = vld [vmem:[%s5 + $0xb8] sm:$0xff]
    %v1499 = vld [vmem:[%s6] sm:$0x1]
    %v1501 = vlaneseq
    %v1502 = vshrl.u32 %v1501, 7
    %v1503 = vsub.s32 0, %v1502
    %v1504 = vrot.slane %v1499, %v1503
    %v1507 = vsel %vm82, %v1474, 0
    %1509 = vmatprep.subr.mxu0 0.0
    %1510 = vmatpush1.msra.mxu0 %v1490
    %1511 = vmatprep.subr.mxu0 0.0
    %1512 = vmatpush1.msra.mxu0 %v1489
    %1513 = vmatprep.subr.mxu0 0.0
    %1514 = vmatpush1.msra.mxu0 %v1488
    %1515 = vmatprep.subr.mxu0 0.0
    %1516 = vmatpush1.msra.mxu0 %v1487
    %1517 = vmatprep.subr.mxu0 0.0
    %1518 = vmatpush1.msra.mxu0 %v1486
    %1519 = vmatprep.subr.mxu0 0.0
    %1520 = vmatpush1.msra.mxu0 %v1485
    %1521 = vmatprep.subr.mxu0 0.0
    %1522 = vmatpush1.msra.mxu0 %v1484
    %1523 = vmatprep.subr.mxu0 0.0
    %1524 = vmatpush1.msra.mxu0 %v1483
    %1525 = vmatprep.subr.mxu0 0.0
    %1526 = vmatpush1.msra.mxu0 %v1482
    %1527 = vmatprep.subr.mxu0 0.0
    %1528 = vmatpush1.msra.mxu0 %v1481
    %1529 = vmatprep.subr.mxu0 0.0
    %1530 = vmatpush1.msra.mxu0 %v1480
    %1531 = vmatprep.subr.mxu0 0.0
    %1532 = vmatpush1.msra.mxu0 %v1479
    %1533 = vmatprep.subr.mxu0 0.0
    %1534 = vmatpush1.msra.mxu0 %v1478
    %1535 = vmatprep.subr.mxu0 0.0
    %1536 = vmatpush1.msra.mxu0 %v1477
    %1537 = vmatprep.subr.mxu0 0.0
    %1538 = vmatpush1.msra.mxu0 %v1476
    %1539 = vmatprep.subr.mxu0 0.0
    %1540 = vmatpush1.msra.mxu0 %v1475
    %1541 = vmatprep.subr.mxu0 0.0
    %1542 = vmatpush2.msra.mxu0 0.0
    %1543 = vmatprep.subr.mxu0 0.0
    %1544 = vmatpush2.msra.mxu0 0.0
    %1545 = vmatprep.subr.mxu0 0.0
    %1546 = vmatpush2.msra.mxu0 0.0
    %1547 = vmatprep.subr.mxu0 0.0
    %1548 = vmatpush2.msra.mxu0 0.0
    %1549 = vmatprep.subr.mxu0 0.0
    %1550 = vmatpush2.msra.mxu0 0.0
    %1551 = vmatprep.subr.mxu0 0.0
    %1552 = vmatpush2.msra.mxu0 0.0
    %1553 = vmatprep.subr.mxu0 0.0
    %1554 = vmatpush2.msra.mxu0 0.0
    %1555 = vmatprep.subr.mxu0 0.0
    %1556 = vmatpush2.msra.mxu0 0.0
    %1557 = vmatprep.subr.mxu0 0.0
    %1558 = vmatpush2.msra.mxu0 %v1498
    %1559 = vmatprep.subr.mxu0 0.0
    %1560 = vmatpush2.msra.mxu0 %v1497
    %1561 = vmatprep.subr.mxu0 0.0
    %1562 = vmatpush2.msra.mxu0 %v1496
    %1563 = vmatprep.subr.mxu0 0.0
    %1564 = vmatpush2.msra.mxu0 %v1495
    %1565 = vmatprep.subr.mxu0 0.0
    %1566 = vmatpush2.msra.mxu0 %v1494
    %1567 = vmatprep.subr.mxu0 0.0
    %1568 = vmatpush2.msra.mxu0 %v1493
    %1569 = vmatprep.subr.mxu0 0.0
    %1570 = vmatpush2.msra.mxu0 %v1492
    %1571 = vmatprep.subr.mxu0 0.0
    %1572 = vmatpush2.msra.mxu0 %v1491
    %1573 = vmatprep.mubr.f32.mxu0 %v1507
    %1574 = vmatmul.mubr.f32.gmra.mxu0 %v1473
    %v1575 = vpop.f32.mrf.mxu0
    %v1576 = vadd.f32 %v1504, %v1575
    %v1577 = vpop.f32.mrf.mxu0
    %1578 = vdwg.mxu0
    %vm1579 = vcmask 517120
    %v1580 = vsel %vm1579, %v1576, 0.0
    %1581 = vadd.xlane.f32.xlu0 %v1580
    %v1582 = vpop.xlane.xlu0 %1581
    %v1583 = vrcp.pop 64.0
    %v1584 = vmul.f32 %v1582, %v1583
    %v1585 = vsub.f32 %v1576, %v1584
    %v1586 = vmul.f32 %v1585, %v1585
    %v1587 = vsel %vm1579, %v1586, 0.0
    %1588 = vadd.xlane.f32.xlu0 %v1587
    %v1589 = vpop.xlane.xlu0 %1588
    %v1590 = vmul.f32 %v1589, %v1583
    %v1591 = vadd.f32 %v1590, 1e-05
    %v1592 = vrsqrt.pop %v1591
    %v1593 = vmul.f32 %v1585, %v1592
    %v1594 = vld [vmem:[%s7] sm:$0x1]
    %v1596 = vlaneseq
    %v1597 = vshrl.u32 %v1596, 7
    %v1598 = vsub.s32 0, %v1597
    %v1599 = vrot.slane %v1594, %v1598
    %v1601 = vmul.f32 %v1593, %v1599
    %v1602 = vld [vmem:[%s8] sm:$0x1]
    %v1604 = vlaneseq
    %v1605 = vshrl.u32 %v1604, 7
    %v1606 = vsub.s32 0, %v1605
    %v1607 = vrot.slane %v1602, %v1606
    %v1609 = vadd.f32 %v1601, %v1607
    %v1610 = vmax.f32 %v1609, 0.0
    %v1611 = vld [vmem:[%s9] sm:$0xff]
    %v1612 = vld [vmem:[%s9 + $0x8] sm:$0xff]
    %v1613 = vld [vmem:[%s9 + $0x10] sm:$0xff]
    %v1614 = vld [vmem:[%s9 + $0x18] sm:$0xff]
    %v1615 = vld [vmem:[%s9 + $0x20] sm:$0xff]
    %v1616 = vld [vmem:[%s9 + $0x28] sm:$0xff]
    %v1617 = vld [vmem:[%s9 + $0x30] sm:$0xff]
    %v1618 = vld [vmem:[%s9 + $0x38] sm:$0xff]
    %v1619 = vld [vmem:[%s10] sm:$0x1]
    %v1621 = vlaneseq
    %v1622 = vshrl.u32 %v1621, 7
    %v1623 = vsub.s32 0, %v1622
    %v1624 = vrot.slane %v1619, %v1623
    %v1627 = vsel %vm82, %v1610, 0
    %1629 = vmatprep.subr.mxu0 0.0
    %1630 = vmatpush1.msra.mxu0 0.0
    %1631 = vmatprep.subr.mxu0 0.0
    %1632 = vmatpush1.msra.mxu0 0.0
    %1633 = vmatprep.subr.mxu0 0.0
    %1634 = vmatpush1.msra.mxu0 0.0
    %1635 = vmatprep.subr.mxu0 0.0
    %1636 = vmatpush1.msra.mxu0 0.0
    %1637 = vmatprep.subr.mxu0 0.0
    %1638 = vmatpush1.msra.mxu0 0.0
    %1639 = vmatprep.subr.mxu0 0.0
    %1640 = vmatpush1.msra.mxu0 0.0
    %1641 = vmatprep.subr.mxu0 0.0
    %1642 = vmatpush1.msra.mxu0 0.0
    %1643 = vmatprep.subr.mxu0 0.0
    %1644 = vmatpush1.msra.mxu0 0.0
    %1645 = vmatprep.subr.mxu0 0.0
    %1646 = vmatpush1.msra.mxu0 %v1618
    %1647 = vmatprep.subr.mxu0 0.0
    %1648 = vmatpush1.msra.mxu0 %v1617
    %1649 = vmatprep.subr.mxu0 0.0
    %1650 = vmatpush1.msra.mxu0 %v1616
    %1651 = vmatprep.subr.mxu0 0.0
    %1652 = vmatpush1.msra.mxu0 %v1615
    %1653 = vmatprep.subr.mxu0 0.0
    %1654 = vmatpush1.msra.mxu0 %v1614
    %1655 = vmatprep.subr.mxu0 0.0
    %1656 = vmatpush1.msra.mxu0 %v1613
    %1657 = vmatprep.subr.mxu0 0.0
    %1658 = vmatpush1.msra.mxu0 %v1612
    %1659 = vmatprep.subr.mxu0 0.0
    %1660 = vmatpush1.msra.mxu0 %v1611
    %1661 = vmatprep.subr.mxu0 0.0
    %1662 = vmatpush2.msra.mxu0 0.0
    %1663 = vmatprep.subr.mxu0 0.0
    %1664 = vmatpush2.msra.mxu0 0.0
    %1665 = vmatprep.subr.mxu0 0.0
    %1666 = vmatpush2.msra.mxu0 0.0
    %1667 = vmatprep.subr.mxu0 0.0
    %1668 = vmatpush2.msra.mxu0 0.0
    %1669 = vmatprep.subr.mxu0 0.0
    %1670 = vmatpush2.msra.mxu0 0.0
    %1671 = vmatprep.subr.mxu0 0.0
    %1672 = vmatpush2.msra.mxu0 0.0
    %1673 = vmatprep.subr.mxu0 0.0
    %1674 = vmatpush2.msra.mxu0 0.0
    %1675 = vmatprep.subr.mxu0 0.0
    %1676 = vmatpush2.msra.mxu0 0.0
    %1677 = vmatprep.subr.mxu0 0.0
    %1678 = vmatpush2.msra.mxu0 0.0
    %1679 = vmatprep.subr.mxu0 0.0
    %1680 = vmatpush2.msra.mxu0 0.0
    %1681 = vmatprep.subr.mxu0 0.0
    %1682 = vmatpush2.msra.mxu0 0.0
    %1683 = vmatprep.subr.mxu0 0.0
    %1684 = vmatpush2.msra.mxu0 0.0
    %1685 = vmatprep.subr.mxu0 0.0
    %1686 = vmatpush2.msra.mxu0 0.0
    %1687 = vmatprep.subr.mxu0 0.0
    %1688 = vmatpush2.msra.mxu0 0.0
    %1689 = vmatprep.subr.mxu0 0.0
    %1690 = vmatpush2.msra.mxu0 0.0
    %1691 = vmatprep.subr.mxu0 0.0
    %1692 = vmatpush2.msra.mxu0 0.0
    %1693 = vmatprep.mubr.f32.mxu0 0.0
    %1694 = vmatmul.mubr.f32.gmra.mxu0 %v1627
    %v1695 = vpop.f32.mrf.mxu0
    %v1696 = vadd.f32 %v1624, %v1695
    %v1697 = vpop.f32.mrf.mxu0
    %1698 = vdwg.mxu0
    %vm1699 = vcmask 25600
    %1700 = vst.msk [vmem:[%s11] sm:$0x3] %vm1699, %v1696
    // Predicated region
    $region54: #{abcnn_forward.1} parent=1 // pred_check
      _
    $region55: #{abcnn_forward.1} parent=1 // pred_check_branch
      %1702 = sbr.rel (0) target = $region57
    $region56: #{abcnn_forward.1} parent=1 // pred_region
      _
    $region57: #{abcnn_forward.1} parent=1 // pred_fallthru
      _
    // Predicated region
    $region58: #{abcnn_forward.1} parent=1 // pred_check
      _
    $region59: #{abcnn_forward.1} parent=1 // pred_check_branch
      %1704 = sbr.rel (0) target = $region61
    $region60: #{abcnn_forward.1} parent=1 // pred_region
      _
    $region61: #{abcnn_forward.1} parent=1 // pred_fallthru
      _
    %1705 = vsyncpa [#allocation3], 1
    %1706 = vsyncpa [#allocation5], 1

</llo_original>
